<compile_context>
chip_gen: v5e
topology: v5e:2x2
jax: 0.10.0
libtpu: 0.0.40
codegen_flags: <defaults>
</compile_context>

<pallas_src>
import functools

import numpy as np

import jax
import jax.numpy as jnp
from jax.experimental import pallas as pl
from jax.experimental.pallas import tpu as pltpu


def mp_kernel(x_ref, dt_ref, g_ref, codes_ref, recon_ref, proj_ref, *, sparsity):
    """Batched greedy matching pursuit (Gram recurrence) for one batch tile.

    x_ref:     (TILE_N, F_pad)  input signals
    dt_ref:    (A_pad, F_pad)   dictionary transpose D^T (resident)
    g_ref:     (A_pad, A_pad)   Gram matrix G = D^T D (resident)
    codes_ref: (TILE_N, A_pad)  sparse codes (output, accumulated in place)
    recon_ref: (TILE_N, F_pad)  reconstruction codes @ D^T (output)
    proj_ref:  (TILE_N, A_pad)  VMEM scratch: running projections residual @ D
    """
    tile_n, a_pad = codes_ref.shape
    atom_ids = jax.lax.broadcasted_iota(jnp.int32, (1, a_pad), 1)  # hoisted once

    # proj_0 = x @ D  (contracts F against D^T's lane dim; this transposed-RHS
    # contraction happens once per tile, not once per sparsity step).
    proj_ref[...] = jax.lax.dot_general(
        x_ref[...], dt_ref[...], (((1,), (1,)), ((), ())),
        preferred_element_type=jnp.float32)
    codes_ref[...] = jnp.zeros((tile_n, a_pad), jnp.float32)

    # Padded atoms need no mask: their D^T rows and G rows/cols are exactly
    # zero, so their projections stay 0 and their indices lose every tie-break.
    for t in range(sparsity):  # small static trip count -> unrolled
        proj = proj_ref[...]
        absp = jnp.abs(proj)
        row_max = jnp.max(absp, axis=-1, keepdims=True)                 # (TILE_N, 1)
        # first index achieving max |projection| (torch.argmax tie rule)
        best = jnp.min(jnp.where(absp >= row_max, atom_ids, a_pad),
                       axis=-1, keepdims=True)                          # (TILE_N, 1)
        delta = jnp.where(atom_ids == best, proj, 0.0)                  # (TILE_N, A_pad)
        codes_ref[...] += delta
        if t + 1 < sparsity:  # last step's projections are never consumed
            # proj_{t+1} = proj_t - coef * G[best, :]  ==  proj_t - delta @ G
            proj_ref[...] = proj - jnp.dot(delta, g_ref[...],
                                           preferred_element_type=jnp.float32)

    # recon = codes @ D^T (properly oriented: contracts D^T's sublane dim).
    recon_ref[...] = jnp.dot(codes_ref[...], dt_ref[...],
                             preferred_element_type=jnp.float32)


def _round_up(v, m):
    return ((v + m - 1) // m) * m


def _vmem_limit_bytes(tile_n, a_pad, f_pad, single_buffer_resident):
    dict_bufs = 1 if single_buffer_resident else 2
    resident = dict_bufs * 4 * (a_pad * f_pad + a_pad * a_pad)      # D^T, G
    streamed = 2 * 4 * (2 * tile_n * f_pad + tile_n * a_pad)        # x, recon, codes tiles
    scratch = 4 * tile_n * a_pad                                    # proj
    need = resident + streamed + scratch + (8 << 20)                # headroom
    # >= 32 MiB covers v5e's 16 MiB default scoped limit; <= 64 MiB stays
    # within v7x's physical VMEM.
    return int(min(64 << 20, max(32 << 20, need)))


def prepare_dictionary(dictionary):
    """Pad D^T to lane-dense tiles and precompute the Gram matrix G = D^T D.

    Cacheable across calls for a fixed dictionary (hoists the per-call padding
    and Gram work off the kernel launch path).
    """
    f, a = dictionary.shape
    f_pad = _round_up(f, 128)
    a_pad = _round_up(a, 128)
    dt = dictionary.astype(jnp.float32).T                            # (A, F)
    dt_p = jnp.pad(dt, ((0, a_pad - a), (0, f_pad - f)))             # (A_pad, F_pad)
    g_p = jnp.matmul(dt_p, dt_p.T,
                     precision=jax.lax.Precision.HIGHEST)            # (A_pad, A_pad)
    return dt_p, g_p


def _call_mp_kernel(x_p, dt_p, g_p, *, tile_n, sparsity, single_buffer_resident):
    n_pad, f_pad = x_p.shape
    a_pad = dt_p.shape[0]
    resident_kw = (dict(pipeline_mode=pl.Buffered(1))
                   if single_buffer_resident else {})

    grid_spec = pltpu.PrefetchScalarGridSpec(
        num_scalar_prefetch=0,
        grid=(n_pad // tile_n,),
        in_specs=[
            pl.BlockSpec((tile_n, f_pad), lambda i: (i, 0)),          # X tile
            pl.BlockSpec((a_pad, f_pad), lambda i: (0, 0), **resident_kw),  # D^T
            pl.BlockSpec((a_pad, a_pad), lambda i: (0, 0), **resident_kw),  # G
        ],
        out_specs=[
            pl.BlockSpec((tile_n, a_pad), lambda i: (i, 0)),          # codes
            pl.BlockSpec((tile_n, f_pad), lambda i: (i, 0)),          # recon
        ],
        scratch_shapes=[pltpu.VMEM((tile_n, a_pad), jnp.float32)],    # proj
    )

    return pl.pallas_call(
        functools.partial(mp_kernel, sparsity=sparsity),
        out_shape=(
            jax.ShapeDtypeStruct((n_pad, a_pad), jnp.float32),
            jax.ShapeDtypeStruct((n_pad, f_pad), jnp.float32),
        ),
        grid_spec=grid_spec,
        compiler_params=pltpu.CompilerParams(
            dimension_semantics=("parallel",),   # batch tiles across TCs (v7x)
            vmem_limit_bytes=_vmem_limit_bytes(tile_n, a_pad, f_pad,
                                               single_buffer_resident)),
    )(x_p, dt_p, g_p)


def dictionary_learning_forward(x, dictionary, classifier, labels,
                                sparsity, beta=0.05, prepared=None):
    """Returns (recon, predictions, loss, sparse_codes) like the PyTorch module."""
    n, f = x.shape
    a = dictionary.shape[1]

    if prepared is None:
        prepared = prepare_dictionary(dictionary)
    dt_p, g_p = prepared
    a_pad, f_pad = dt_p.shape

    tile_n = min(_round_up(n, 8), 256)
    n_pad = _round_up(n, tile_n)
    # Prefer >= 2 batch tiles when possible so a 2-TensorCore chip (v7x) gets
    # work on both cores via the "parallel" axis (neutral on v5e/v6e).
    if n_pad // tile_n < 2 and tile_n > 8:
        tile_n = _round_up(pl.cdiv(n, 2), 8)
        n_pad = _round_up(n, tile_n)

    x_f32 = x.astype(jnp.float32)
    x_p = jnp.pad(x_f32, ((0, n_pad - n), (0, f_pad - f)))

    try:
        codes_p, recon_p = _call_mp_kernel(
            x_p, dt_p, g_p, tile_n=tile_n, sparsity=sparsity,
            single_buffer_resident=True)
    except Exception:
        # Fallback for runtimes that reject pipeline_mode=pl.Buffered(1); the
        # only cost is double-buffering the resident D^T / Gram tiles.
        codes_p, recon_p = _call_mp_kernel(
            x_p, dt_p, g_p, tile_n=tile_n, sparsity=sparsity,
            single_buffer_resident=False)

    codes = codes_p[:n, :a]
    recon = recon_p[:n, :f]

    # ---- classifier + losses in plain JAX on the kernel outputs ------------
    predictions = jnp.matmul(codes, classifier.T.astype(jnp.float32),
                             precision=jax.lax.Precision.HIGHEST)     # (N, 2)

    mse = jnp.mean((recon - x_f32) ** 2)

    m = jnp.max(predictions, axis=-1, keepdims=True)
    lse = m[:, 0] + jnp.log(jnp.sum(jnp.exp(predictions - m), axis=-1))
    correct = jnp.take_along_axis(
        predictions, labels.reshape(-1, 1).astype(jnp.int32), axis=-1)[:, 0]
    ce = jnp.mean(lse - correct)

    loss = mse + beta * ce
    return recon, predictions, loss, codes


def xavier_uniform(key, shape):
    fan_sum = shape[0] + shape[1]
    bound = (6.0 / fan_sum) ** 0.5
    return jax.random.uniform(key, shape, jnp.float32, -bound, bound)


def _reference_forward(x, dictionary, classifier, labels, sparsity, beta):
    """Pure numpy port of the PyTorch forward (per-sample greedy MP)."""
    x = np.asarray(x, np.float32)
    d = np.asarray(dictionary, np.float32)
    c = np.asarray(classifier, np.float32)
    y = np.asarray(labels)
    n = x.shape[0]
    a = d.shape[1]
    codes = np.zeros((n, a), np.float32)
    for i in range(n):
        r = x[i].copy()
        for _ in range(sparsity):
            p = r @ d
            b = int(np.argmax(np.abs(p)))
            codes[i, b] += p[b]
            r = r - p[b] * d[:, b]
    recon = codes @ d.T
    preds = codes @ c.T
    m = preds.max(-1, keepdims=True)
    lse = m[:, 0] + np.log(np.exp(preds - m).sum(-1))
    ce = float(np.mean(lse - preds[np.arange(n), y]))
    mse = float(np.mean((recon - x) ** 2))
    return recon, preds, mse + beta * ce, codes


if __name__ == "__main__":
    # Small deterministic problem: 8 samples, feature_dim=64, num_atoms=32.
    N, F, A = 8, 64, 32
    sparsity = 4
    beta = 0.05

    key = jax.random.PRNGKey(0)
    k_x, k_d, k_c, k_l = jax.random.split(key, 4)

    x = jax.random.normal(k_x, (N, F), jnp.float32)
    dictionary = xavier_uniform(k_d, (F, A))        # nn.Parameter(feature_dim, num_atoms)
    classifier = xavier_uniform(k_c, (2, A))        # nn.Parameter(2, num_atoms)
    labels = jax.random.randint(k_l, (N,), 0, 2, jnp.int32)

    recon, predictions, loss, codes = dictionary_learning_forward(
        x, dictionary, classifier, labels, sparsity, beta)
    jax.block_until_ready((recon, predictions, loss, codes))

    # Numerical check against the per-sample reference semantics.
    r_recon, r_preds, r_loss, r_codes = _reference_forward(
        x, dictionary, classifier, labels, sparsity, beta)
    assert np.allclose(np.asarray(codes), r_codes, rtol=1e-3, atol=1e-3)
    assert np.allclose(np.asarray(recon), r_recon, rtol=1e-3, atol=1e-3)
    assert np.allclose(np.asarray(predictions), r_preds, rtol=1e-3, atol=1e-3)
    assert np.allclose(float(loss), r_loss, rtol=1e-3, atol=1e-3)

    print("KERNEL_OK")
</pallas_src>

<mosaic_0001>
module attributes {stable_mosaic.version = 11 : i64} {
  func.func @mp_kernel(%arg0: i32, %arg1: memref<8x128xf32, #tpu.memory_space<vmem>>, %arg2: memref<128x128xf32, #tpu.memory_space<vmem>>, %arg3: memref<128x128xf32, #tpu.memory_space<vmem>>, %arg4: memref<8x128xf32, #tpu.memory_space<vmem>>, %arg5: memref<8x128xf32, #tpu.memory_space<vmem>>, %arg6: memref<8x128xf32, #tpu.memory_space<vmem>>) attributes {dimension_semantics = [#tpu.dimension_semantics<parallel>], iteration_bounds = array<i64: 1>, scalar_prefetch = 0 : i64, scratch_operands = 1 : i64, tpu.core_type = #tpu.core_type<tc>, window_params = [{transform_indices = @transform_0, window_bounds = array<i64: 8, 128>}, {pipeline_mode = #tpu.pipeline_mode<synchronous>, transform_indices = @transform_1, window_bounds = array<i64: 128, 128>}, {pipeline_mode = #tpu.pipeline_mode<synchronous>, transform_indices = @transform_2, window_bounds = array<i64: 128, 128>}, {transform_indices = @transform_3, window_bounds = array<i64: 8, 128>}, {transform_indices = @transform_4, window_bounds = array<i64: 8, 128>}]} {
    %0 = tpu.iota {dimensions = array<i32: 1>} : vector<1x128xi32>
    %c0 = arith.constant 0 : index
    %c0_0 = arith.constant 0 : index
    %1 = vector.load %arg1[%c0, %c0_0] : memref<8x128xf32, #tpu.memory_space<vmem>>, vector<8x128xf32>
    %c0_1 = arith.constant 0 : index
    %c0_2 = arith.constant 0 : index
    %2 = vector.load %arg2[%c0_1, %c0_2] : memref<128x128xf32, #tpu.memory_space<vmem>>, vector<128x128xf32>
    %cst = arith.constant dense<0.000000e+00> : vector<8x128xf32>
    %3 = tpu.matmul %1, %2, %cst {dimension_numbers = #tpu.dot_dimension_numbers<[1], [1], [0], [0], [0, 0, 1, 0], [], []>} : vector<8x128xf32>, vector<128x128xf32>, vector<8x128xf32> -> vector<8x128xf32>
    %c0_3 = arith.constant 0 : index
    %c0_4 = arith.constant 0 : index
    %4 = vector.load %arg6[%c0_3, %c0_4] : memref<8x128xf32, #tpu.memory_space<vmem>>, vector<8x128xf32>
    tpu.vector_store %arg6[%c0_3, %c0_4], %3 {strides = array<i32>} : memref<8x128xf32, #tpu.memory_space<vmem>>, vector<8x128xf32>,
    %cst_5 = arith.constant 0.000000e+00 : f32
    %5 = vector.broadcast %cst_5 : f32 to vector<8x128xf32>
    %c0_6 = arith.constant 0 : index
    %c0_7 = arith.constant 0 : index
    %6 = vector.load %arg4[%c0_6, %c0_7] : memref<8x128xf32, #tpu.memory_space<vmem>>, vector<8x128xf32>
    tpu.vector_store %arg4[%c0_6, %c0_7], %5 {strides = array<i32>} : memref<8x128xf32, #tpu.memory_space<vmem>>, vector<8x128xf32>,
    %c0_8 = arith.constant 0 : index
    %c0_9 = arith.constant 0 : index
    %7 = vector.load %arg6[%c0_8, %c0_9] : memref<8x128xf32, #tpu.memory_space<vmem>>, vector<8x128xf32>
    %8 = math.absf %7 : vector<8x128xf32>
    %cst_10 = arith.constant dense<0xFF800000> : vector<8xf32>
    %9 = vector.multi_reduction <maximumf>, %8, %cst_10 [1] : vector<8x128xf32> to vector<8xf32>
    %10 = vector.shape_cast %9 : vector<8xf32> to vector<8x1xf32>
    %11 = vector.broadcast %10 : vector<8x1xf32> to vector<8x128xf32>
    %12 = arith.cmpf oge, %8, %11 : vector<8x128xf32>
    %c128_i32 = arith.constant 128 : i32
    %13 = vector.shape_cast %0 : vector<1x128xi32> to vector<1x128xi32>
    %14 = vector.broadcast %13 : vector<1x128xi32> to vector<8x128xi32>
    %15 = vector.broadcast %c128_i32 : i32 to vector<8x128xi32>
    %16 = arith.select %12, %14, %15 : vector<8x128xi1>, vector<8x128xi32>
    %cst_11 = arith.constant dense<2147483647> : vector<8xi32>
    %17 = vector.multi_reduction <minsi>, %16, %cst_11 [1] : vector<8x128xi32> to vector<8xi32>
    %18 = vector.shape_cast %17 : vector<8xi32> to vector<8x1xi32>
    %19 = vector.broadcast %0 : vector<1x128xi32> to vector<8x128xi32>
    %20 = vector.broadcast %18 : vector<8x1xi32> to vector<8x128xi32>
    %21 = arith.cmpi eq, %19, %20 : vector<8x128xi32>
    %cst_12 = arith.constant 0.000000e+00 : f32
    %22 = vector.broadcast %cst_12 : f32 to vector<8x128xf32>
    %23 = arith.select %21, %7, %22 : vector<8x128xi1>, vector<8x128xf32>
    %c0_13 = arith.constant 0 : index
    %c0_14 = arith.constant 0 : index
    %24 = vector.load %arg4[%c0_13, %c0_14] : memref<8x128xf32, #tpu.memory_space<vmem>>, vector<8x128xf32>
    %25 = arith.addf %24, %23 : vector<8x128xf32>
    %c0_15 = arith.constant 0 : index
    %c0_16 = arith.constant 0 : index
    %26 = vector.load %arg4[%c0_15, %c0_16] : memref<8x128xf32, #tpu.memory_space<vmem>>, vector<8x128xf32>
    tpu.vector_store %arg4[%c0_15, %c0_16], %25 {strides = array<i32>} : memref<8x128xf32, #tpu.memory_space<vmem>>, vector<8x128xf32>,
    %c0_17 = arith.constant 0 : index
    %c0_18 = arith.constant 0 : index
    %27 = vector.load %arg3[%c0_17, %c0_18] : memref<128x128xf32, #tpu.memory_space<vmem>>, vector<128x128xf32>
    %cst_19 = arith.constant dense<0.000000e+00> : vector<8x128xf32>
    %28 = tpu.matmul %23, %27, %cst_19 {dimension_numbers = #tpu.dot_dimension_numbers<[1], [0], [0], [1], [0, 0, 1, 1], [], []>} : vector<8x128xf32>, vector<128x128xf32>, vector<8x128xf32> -> vector<8x128xf32>
    %29 = arith.subf %7, %28 : vector<8x128xf32>
    %c0_20 = arith.constant 0 : index
    %c0_21 = arith.constant 0 : index
    %30 = vector.load %arg6[%c0_20, %c0_21] : memref<8x128xf32, #tpu.memory_space<vmem>>, vector<8x128xf32>
    tpu.vector_store %arg6[%c0_20, %c0_21], %29 {strides = array<i32>} : memref<8x128xf32, #tpu.memory_space<vmem>>, vector<8x128xf32>,
    %c0_22 = arith.constant 0 : index
    %c0_23 = arith.constant 0 : index
    %31 = vector.load %arg6[%c0_22, %c0_23] : memref<8x128xf32, #tpu.memory_space<vmem>>, vector<8x128xf32>
    %32 = math.absf %31 : vector<8x128xf32>
    %cst_24 = arith.constant dense<0xFF800000> : vector<8xf32>
    %33 = vector.multi_reduction <maximumf>, %32, %cst_24 [1] : vector<8x128xf32> to vector<8xf32>
    %34 = vector.shape_cast %33 : vector<8xf32> to vector<8x1xf32>
    %35 = vector.broadcast %34 : vector<8x1xf32> to vector<8x128xf32>
    %36 = arith.cmpf oge, %32, %35 : vector<8x128xf32>
    %c128_i32_25 = arith.constant 128 : i32
    %37 = vector.shape_cast %0 : vector<1x128xi32> to vector<1x128xi32>
    %38 = vector.broadcast %37 : vector<1x128xi32> to vector<8x128xi32>
    %39 = vector.broadcast %c128_i32_25 : i32 to vector<8x128xi32>
    %40 = arith.select %36, %38, %39 : vector<8x128xi1>, vector<8x128xi32>
    %cst_26 = arith.constant dense<2147483647> : vector<8xi32>
    %41 = vector.multi_reduction <minsi>, %40, %cst_26 [1] : vector<8x128xi32> to vector<8xi32>
    %42 = vector.shape_cast %41 : vector<8xi32> to vector<8x1xi32>
    %43 = vector.broadcast %0 : vector<1x128xi32> to vector<8x128xi32>
    %44 = vector.broadcast %42 : vector<8x1xi32> to vector<8x128xi32>
    %45 = arith.cmpi eq, %43, %44 : vector<8x128xi32>
    %cst_27 = arith.constant 0.000000e+00 : f32
    %46 = vector.broadcast %cst_27 : f32 to vector<8x128xf32>
    %47 = arith.select %45, %31, %46 : vector<8x128xi1>, vector<8x128xf32>
    %c0_28 = arith.constant 0 : index
    %c0_29 = arith.constant 0 : index
    %48 = vector.load %arg4[%c0_28, %c0_29] : memref<8x128xf32, #tpu.memory_space<vmem>>, vector<8x128xf32>
    %49 = arith.addf %48, %47 : vector<8x128xf32>
    %c0_30 = arith.constant 0 : index
    %c0_31 = arith.constant 0 : index
    %50 = vector.load %arg4[%c0_30, %c0_31] : memref<8x128xf32, #tpu.memory_space<vmem>>, vector<8x128xf32>
    tpu.vector_store %arg4[%c0_30, %c0_31], %49 {strides = array<i32>} : memref<8x128xf32, #tpu.memory_space<vmem>>, vector<8x128xf32>,
    %c0_32 = arith.constant 0 : index
    %c0_33 = arith.constant 0 : index
    %51 = vector.load %arg3[%c0_32, %c0_33] : memref<128x128xf32, #tpu.memory_space<vmem>>, vector<128x128xf32>
    %cst_34 = arith.constant dense<0.000000e+00> : vector<8x128xf32>
    %52 = tpu.matmul %47, %51, %cst_34 {dimension_numbers = #tpu.dot_dimension_numbers<[1], [0], [0], [1], [0, 0, 1, 1], [], []>} : vector<8x128xf32>, vector<128x128xf32>, vector<8x128xf32> -> vector<8x128xf32>
    %53 = arith.subf %31, %52 : vector<8x128xf32>
    %c0_35 = arith.constant 0 : index
    %c0_36 = arith.constant 0 : index
    %54 = vector.load %arg6[%c0_35, %c0_36] : memref<8x128xf32, #tpu.memory_space<vmem>>, vector<8x128xf32>
    tpu.vector_store %arg6[%c0_35, %c0_36], %53 {strides = array<i32>} : memref<8x128xf32, #tpu.memory_space<vmem>>, vector<8x128xf32>,
    %c0_37 = arith.constant 0 : index
    %c0_38 = arith.constant 0 : index
    %55 = vector.load %arg6[%c0_37, %c0_38] : memref<8x128xf32, #tpu.memory_space<vmem>>, vector<8x128xf32>
    %56 = math.absf %55 : vector<8x128xf32>
    %cst_39 = arith.constant dense<0xFF800000> : vector<8xf32>
    %57 = vector.multi_reduction <maximumf>, %56, %cst_39 [1] : vector<8x128xf32> to vector<8xf32>
    %58 = vector.shape_cast %57 : vector<8xf32> to vector<8x1xf32>
    %59 = vector.broadcast %58 : vector<8x1xf32> to vector<8x128xf32>
    %60 = arith.cmpf oge, %56, %59 : vector<8x128xf32>
    %c128_i32_40 = arith.constant 128 : i32
    %61 = vector.shape_cast %0 : vector<1x128xi32> to vector<1x128xi32>
    %62 = vector.broadcast %61 : vector<1x128xi32> to vector<8x128xi32>
    %63 = vector.broadcast %c128_i32_40 : i32 to vector<8x128xi32>
    %64 = arith.select %60, %62, %63 : vector<8x128xi1>, vector<8x128xi32>
    %cst_41 = arith.constant dense<2147483647> : vector<8xi32>
    %65 = vector.multi_reduction <minsi>, %64, %cst_41 [1] : vector<8x128xi32> to vector<8xi32>
    %66 = vector.shape_cast %65 : vector<8xi32> to vector<8x1xi32>
    %67 = vector.broadcast %0 : vector<1x128xi32> to vector<8x128xi32>
    %68 = vector.broadcast %66 : vector<8x1xi32> to vector<8x128xi32>
    %69 = arith.cmpi eq, %67, %68 : vector<8x128xi32>
    %cst_42 = arith.constant 0.000000e+00 : f32
    %70 = vector.broadcast %cst_42 : f32 to vector<8x128xf32>
    %71 = arith.select %69, %55, %70 : vector<8x128xi1>, vector<8x128xf32>
    %c0_43 = arith.constant 0 : index
    %c0_44 = arith.constant 0 : index
    %72 = vector.load %arg4[%c0_43, %c0_44] : memref<8x128xf32, #tpu.memory_space<vmem>>, vector<8x128xf32>
    %73 = arith.addf %72, %71 : vector<8x128xf32>
    %c0_45 = arith.constant 0 : index
    %c0_46 = arith.constant 0 : index
    %74 = vector.load %arg4[%c0_45, %c0_46] : memref<8x128xf32, #tpu.memory_space<vmem>>, vector<8x128xf32>
    tpu.vector_store %arg4[%c0_45, %c0_46], %73 {strides = array<i32>} : memref<8x128xf32, #tpu.memory_space<vmem>>, vector<8x128xf32>,
    %c0_47 = arith.constant 0 : index
    %c0_48 = arith.constant 0 : index
    %75 = vector.load %arg3[%c0_47, %c0_48] : memref<128x128xf32, #tpu.memory_space<vmem>>, vector<128x128xf32>
    %cst_49 = arith.constant dense<0.000000e+00> : vector<8x128xf32>
    %76 = tpu.matmul %71, %75, %cst_49 {dimension_numbers = #tpu.dot_dimension_numbers<[1], [0], [0], [1], [0, 0, 1, 1], [], []>} : vector<8x128xf32>, vector<128x128xf32>, vector<8x128xf32> -> vector<8x128xf32>
    %77 = arith.subf %55, %76 : vector<8x128xf32>
    %c0_50 = arith.constant 0 : index
    %c0_51 = arith.constant 0 : index
    %78 = vector.load %arg6[%c0_50, %c0_51] : memref<8x128xf32, #tpu.memory_space<vmem>>, vector<8x128xf32>
    tpu.vector_store %arg6[%c0_50, %c0_51], %77 {strides = array<i32>} : memref<8x128xf32, #tpu.memory_space<vmem>>, vector<8x128xf32>,
    %c0_52 = arith.constant 0 : index
    %c0_53 = arith.constant 0 : index
    %79 = vector.load %arg6[%c0_52, %c0_53] : memref<8x128xf32, #tpu.memory_space<vmem>>, vector<8x128xf32>
    %80 = math.absf %79 : vector<8x128xf32>
    %cst_54 = arith.constant dense<0xFF800000> : vector<8xf32>
    %81 = vector.multi_reduction <maximumf>, %80, %cst_54 [1] : vector<8x128xf32> to vector<8xf32>
    %82 = vector.shape_cast %81 : vector<8xf32> to vector<8x1xf32>
    %83 = vector.broadcast %82 : vector<8x1xf32> to vector<8x128xf32>
    %84 = arith.cmpf oge, %80, %83 : vector<8x128xf32>
    %c128_i32_55 = arith.constant 128 : i32
    %85 = vector.shape_cast %0 : vector<1x128xi32> to vector<1x128xi32>
    %86 = vector.broadcast %85 : vector<1x128xi32> to vector<8x128xi32>
    %87 = vector.broadcast %c128_i32_55 : i32 to vector<8x128xi32>
    %88 = arith.select %84, %86, %87 : vector<8x128xi1>, vector<8x128xi32>
    %cst_56 = arith.constant dense<2147483647> : vector<8xi32>
    %89 = vector.multi_reduction <minsi>, %88, %cst_56 [1] : vector<8x128xi32> to vector<8xi32>
    %90 = vector.shape_cast %89 : vector<8xi32> to vector<8x1xi32>
    %91 = vector.broadcast %0 : vector<1x128xi32> to vector<8x128xi32>
    %92 = vector.broadcast %90 : vector<8x1xi32> to vector<8x128xi32>
    %93 = arith.cmpi eq, %91, %92 : vector<8x128xi32>
    %cst_57 = arith.constant 0.000000e+00 : f32
    %94 = vector.broadcast %cst_57 : f32 to vector<8x128xf32>
    %95 = arith.select %93, %79, %94 : vector<8x128xi1>, vector<8x128xf32>
    %c0_58 = arith.constant 0 : index
    %c0_59 = arith.constant 0 : index
    %96 = vector.load %arg4[%c0_58, %c0_59] : memref<8x128xf32, #tpu.memory_space<vmem>>, vector<8x128xf32>
    %97 = arith.addf %96, %95 : vector<8x128xf32>
    %c0_60 = arith.constant 0 : index
    %c0_61 = arith.constant 0 : index
    %98 = vector.load %arg4[%c0_60, %c0_61] : memref<8x128xf32, #tpu.memory_space<vmem>>, vector<8x128xf32>
    tpu.vector_store %arg4[%c0_60, %c0_61], %97 {strides = array<i32>} : memref<8x128xf32, #tpu.memory_space<vmem>>, vector<8x128xf32>,
    %c0_62 = arith.constant 0 : index
    %c0_63 = arith.constant 0 : index
    %99 = vector.load %arg4[%c0_62, %c0_63] : memref<8x128xf32, #tpu.memory_space<vmem>>, vector<8x128xf32>
    %c0_64 = arith.constant 0 : index
    %c0_65 = arith.constant 0 : index
    %100 = vector.load %arg2[%c0_64, %c0_65] : memref<128x128xf32, #tpu.memory_space<vmem>>, vector<128x128xf32>
    %cst_66 = arith.constant dense<0.000000e+00> : vector<8x128xf32>
    %101 = tpu.matmul %99, %100, %cst_66 {dimension_numbers = #tpu.dot_dimension_numbers<[1], [0], [0], [1], [0, 0, 1, 1], [], []>} : vector<8x128xf32>, vector<128x128xf32>, vector<8x128xf32> -> vector<8x128xf32>
    %c0_67 = arith.constant 0 : index
    %c0_68 = arith.constant 0 : index
    %102 = vector.load %arg5[%c0_67, %c0_68] : memref<8x128xf32, #tpu.memory_space<vmem>>, vector<8x128xf32>
    tpu.vector_store %arg5[%c0_67, %c0_68], %101 {strides = array<i32>} : memref<8x128xf32, #tpu.memory_space<vmem>>, vector<8x128xf32>,
    return
  }
  func.func @transform_0(%arg0: i32) -> (i32, i32) {
    %c0_i32 = arith.constant 0 : i32
    %c0_i32_0 = arith.constant 0 : i32
    return %arg0, %c0_i32 : i32, i32
  }
  func.func @transform_1(%arg0: i32) -> (i32, i32) {
    %c0_i32 = arith.constant 0 : i32
    %c0_i32_0 = arith.constant 0 : i32
    %c0_i32_1 = arith.constant 0 : i32
    return %c0_i32, %c0_i32_0 : i32, i32
  }
  func.func @transform_2(%arg0: i32) -> (i32, i32) {
    %c0_i32 = arith.constant 0 : i32
    %c0_i32_0 = arith.constant 0 : i32
    %c0_i32_1 = arith.constant 0 : i32
    return %c0_i32, %c0_i32_0 : i32, i32
  }
  func.func @transform_3(%arg0: i32) -> (i32, i32) {
    %c0_i32 = arith.constant 0 : i32
    %c0_i32_0 = arith.constant 0 : i32
    return %arg0, %c0_i32 : i32, i32
  }
  func.func @transform_4(%arg0: i32) -> (i32, i32) {
    %c0_i32 = arith.constant 0 : i32
    %c0_i32_0 = arith.constant 0 : i32
    return %arg0, %c0_i32 : i32, i32
  }
}

module attributes {stable_mosaic.version = 11 : i64} {
  func.func @mp_kernel(%arg0: i32, %arg1: memref<8x128xf32, #tpu.memory_space<vmem>>, %arg2: memref<128x128xf32, #tpu.memory_space<vmem>>, %arg3: memref<128x128xf32, #tpu.memory_space<vmem>>, %arg4: memref<8x128xf32, #tpu.memory_space<vmem>>, %arg5: memref<8x128xf32, #tpu.memory_space<vmem>>, %arg6: memref<8x128xf32, #tpu.memory_space<vmem>>) attributes {dimension_semantics = [#tpu.dimension_semantics<parallel>], iteration_bounds = array<i64: 1>, scalar_prefetch = 0 : i64, scratch_operands = 1 : i64, tpu.core_type = #tpu.core_type<tc>, window_params = [{transform_indices = @transform_0, window_bounds = array<i64: 8, 128>}, {pipeline_mode = #tpu.pipeline_mode<synchronous>, transform_indices = @transform_1, window_bounds = array<i64: 128, 128>}, {pipeline_mode = #tpu.pipeline_mode<synchronous>, transform_indices = @transform_2, window_bounds = array<i64: 128, 128>}, {transform_indices = @transform_3, window_bounds = array<i64: 8, 128>}, {transform_indices = @transform_4, window_bounds = array<i64: 8, 128>}]} {
    %0 = tpu.iota {dimensions = array<i32: 1>} : vector<1x128xi32>
    %c0 = arith.constant 0 : index
    %c0_0 = arith.constant 0 : index
    %1 = vector.load %arg1[%c0, %c0_0] : memref<8x128xf32, #tpu.memory_space<vmem>>, vector<8x128xf32>
    %c0_1 = arith.constant 0 : index
    %c0_2 = arith.constant 0 : index
    %2 = vector.load %arg2[%c0_1, %c0_2] : memref<128x128xf32, #tpu.memory_space<vmem>>, vector<128x128xf32>
    %cst = arith.constant dense<0.000000e+00> : vector<8x128xf32>
    %3 = tpu.matmul %1, %2, %cst {dimension_numbers = #tpu.dot_dimension_numbers<[1], [1], [0], [0], [0, 0, 1, 0], [], []>} : vector<8x128xf32>, vector<128x128xf32>, vector<8x128xf32> -> vector<8x128xf32>
    %c0_3 = arith.constant 0 : index
    %c0_4 = arith.constant 0 : index
    %4 = vector.load %arg6[%c0_3, %c0_4] : memref<8x128xf32, #tpu.memory_space<vmem>>, vector<8x128xf32>
    tpu.vector_store %arg6[%c0_3, %c0_4], %3 {strides = array<i32>} : memref<8x128xf32, #tpu.memory_space<vmem>>, vector<8x128xf32>,
    %cst_5 = arith.constant 0.000000e+00 : f32
    %5 = vector.broadcast %cst_5 : f32 to vector<8x128xf32>
    %c0_6 = arith.constant 0 : index
    %c0_7 = arith.constant 0 : index
    %6 = vector.load %arg4[%c0_6, %c0_7] : memref<8x128xf32, #tpu.memory_space<vmem>>, vector<8x128xf32>
    tpu.vector_store %arg4[%c0_6, %c0_7], %5 {strides = array<i32>} : memref<8x128xf32, #tpu.memory_space<vmem>>, vector<8x128xf32>,
    %c0_8 = arith.constant 0 : index
    %c0_9 = arith.constant 0 : index
    %7 = vector.load %arg6[%c0_8, %c0_9] : memref<8x128xf32, #tpu.memory_space<vmem>>, vector<8x128xf32>
    %8 = math.absf %7 : vector<8x128xf32>
    %cst_10 = arith.constant dense<0xFF800000> : vector<8xf32>
    %9 = vector.multi_reduction <maximumf>, %8, %cst_10 [1] : vector<8x128xf32> to vector<8xf32>
    %10 = vector.shape_cast %9 : vector<8xf32> to vector<8x1xf32>
    %11 = vector.broadcast %10 : vector<8x1xf32> to vector<8x128xf32>
    %12 = arith.cmpf oge, %8, %11 : vector<8x128xf32>
    %c128_i32 = arith.constant 128 : i32
    %13 = vector.shape_cast %0 : vector<1x128xi32> to vector<1x128xi32>
    %14 = vector.broadcast %13 : vector<1x128xi32> to vector<8x128xi32>
    %15 = vector.broadcast %c128_i32 : i32 to vector<8x128xi32>
    %16 = arith.select %12, %14, %15 : vector<8x128xi1>, vector<8x128xi32>
    %cst_11 = arith.constant dense<2147483647> : vector<8xi32>
    %17 = vector.multi_reduction <minsi>, %16, %cst_11 [1] : vector<8x128xi32> to vector<8xi32>
    %18 = vector.shape_cast %17 : vector<8xi32> to vector<8x1xi32>
    %19 = vector.broadcast %0 : vector<1x128xi32> to vector<8x128xi32>
    %20 = vector.broadcast %18 : vector<8x1xi32> to vector<8x128xi32>
    %21 = arith.cmpi eq, %19, %20 : vector<8x128xi32>
    %cst_12 = arith.constant 0.000000e+00 : f32
    %22 = vector.broadcast %cst_12 : f32 to vector<8x128xf32>
    %23 = arith.select %21, %7, %22 : vector<8x128xi1>, vector<8x128xf32>
    %c0_13 = arith.constant 0 : index
    %c0_14 = arith.constant 0 : index
    %24 = vector.load %arg4[%c0_13, %c0_14] : memref<8x128xf32, #tpu.memory_space<vmem>>, vector<8x128xf32>
    %25 = arith.addf %24, %23 : vector<8x128xf32>
    %c0_15 = arith.constant 0 : index
    %c0_16 = arith.constant 0 : index
    %26 = vector.load %arg4[%c0_15, %c0_16] : memref<8x128xf32, #tpu.memory_space<vmem>>, vector<8x128xf32>
    tpu.vector_store %arg4[%c0_15, %c0_16], %25 {strides = array<i32>} : memref<8x128xf32, #tpu.memory_space<vmem>>, vector<8x128xf32>,
    %c0_17 = arith.constant 0 : index
    %c0_18 = arith.constant 0 : index
    %27 = vector.load %arg3[%c0_17, %c0_18] : memref<128x128xf32, #tpu.memory_space<vmem>>, vector<128x128xf32>
    %cst_19 = arith.constant dense<0.000000e+00> : vector<8x128xf32>
    %28 = tpu.matmul %23, %27, %cst_19 {dimension_numbers = #tpu.dot_dimension_numbers<[1], [0], [0], [1], [0, 0, 1, 1], [], []>} : vector<8x128xf32>, vector<128x128xf32>, vector<8x128xf32> -> vector<8x128xf32>
    %29 = arith.subf %7, %28 : vector<8x128xf32>
    %c0_20 = arith.constant 0 : index
    %c0_21 = arith.constant 0 : index
    %30 = vector.load %arg6[%c0_20, %c0_21] : memref<8x128xf32, #tpu.memory_space<vmem>>, vector<8x128xf32>
    tpu.vector_store %arg6[%c0_20, %c0_21], %29 {strides = array<i32>} : memref<8x128xf32, #tpu.memory_space<vmem>>, vector<8x128xf32>,
    %c0_22 = arith.constant 0 : index
    %c0_23 = arith.constant 0 : index
    %31 = vector.load %arg6[%c0_22, %c0_23] : memref<8x128xf32, #tpu.memory_space<vmem>>, vector<8x128xf32>
    %32 = math.absf %31 : vector<8x128xf32>
    %cst_24 = arith.constant dense<0xFF800000> : vector<8xf32>
    %33 = vector.multi_reduction <maximumf>, %32, %cst_24 [1] : vector<8x128xf32> to vector<8xf32>
    %34 = vector.shape_cast %33 : vector<8xf32> to vector<8x1xf32>
    %35 = vector.broadcast %34 : vector<8x1xf32> to vector<8x128xf32>
    %36 = arith.cmpf oge, %32, %35 : vector<8x128xf32>
    %c128_i32_25 = arith.constant 128 : i32
    %37 = vector.shape_cast %0 : vector<1x128xi32> to vector<1x128xi32>
    %38 = vector.broadcast %37 : vector<1x128xi32> to vector<8x128xi32>
    %39 = vector.broadcast %c128_i32_25 : i32 to vector<8x128xi32>
    %40 = arith.select %36, %38, %39 : vector<8x128xi1>, vector<8x128xi32>
    %cst_26 = arith.constant dense<2147483647> : vector<8xi32>
    %41 = vector.multi_reduction <minsi>, %40, %cst_26 [1] : vector<8x128xi32> to vector<8xi32>
    %42 = vector.shape_cast %41 : vector<8xi32> to vector<8x1xi32>
    %43 = vector.broadcast %0 : vector<1x128xi32> to vector<8x128xi32>
    %44 = vector.broadcast %42 : vector<8x1xi32> to vector<8x128xi32>
    %45 = arith.cmpi eq, %43, %44 : vector<8x128xi32>
    %cst_27 = arith.constant 0.000000e+00 : f32
    %46 = vector.broadcast %cst_27 : f32 to vector<8x128xf32>
    %47 = arith.select %45, %31, %46 : vector<8x128xi1>, vector<8x128xf32>
    %c0_28 = arith.constant 0 : index
    %c0_29 = arith.constant 0 : index
    %48 = vector.load %arg4[%c0_28, %c0_29] : memref<8x128xf32, #tpu.memory_space<vmem>>, vector<8x128xf32>
    %49 = arith.addf %48, %47 : vector<8x128xf32>
    %c0_30 = arith.constant 0 : index
    %c0_31 = arith.constant 0 : index
    %50 = vector.load %arg4[%c0_30, %c0_31] : memref<8x128xf32, #tpu.memory_space<vmem>>, vector<8x128xf32>
    tpu.vector_store %arg4[%c0_30, %c0_31], %49 {strides = array<i32>} : memref<8x128xf32, #tpu.memory_space<vmem>>, vector<8x128xf32>,
    %c0_32 = arith.constant 0 : index
    %c0_33 = arith.constant 0 : index
    %51 = vector.load %arg3[%c0_32, %c0_33] : memref<128x128xf32, #tpu.memory_space<vmem>>, vector<128x128xf32>
    %cst_34 = arith.constant dense<0.000000e+00> : vector<8x128xf32>
    %52 = tpu.matmul %47, %51, %cst_34 {dimension_numbers = #tpu.dot_dimension_numbers<[1], [0], [0], [1], [0, 0, 1, 1], [], []>} : vector<8x128xf32>, vector<128x128xf32>, vector<8x128xf32> -> vector<8x128xf32>
    %53 = arith.subf %31, %52 : vector<8x128xf32>
    %c0_35 = arith.constant 0 : index
    %c0_36 = arith.constant 0 : index
    %54 = vector.load %arg6[%c0_35, %c0_36] : memref<8x128xf32, #tpu.memory_space<vmem>>, vector<8x128xf32>
    tpu.vector_store %arg6[%c0_35, %c0_36], %53 {strides = array<i32>} : memref<8x128xf32, #tpu.memory_space<vmem>>, vector<8x128xf32>,
    %c0_37 = arith.constant 0 : index
    %c0_38 = arith.constant 0 : index
    %55 = vector.load %arg6[%c0_37, %c0_38] : memref<8x128xf32, #tpu.memory_space<vmem>>, vector<8x128xf32>
    %56 = math.absf %55 : vector<8x128xf32>
    %cst_39 = arith.constant dense<0xFF800000> : vector<8xf32>
    %57 = vector.multi_reduction <maximumf>, %56, %cst_39 [1] : vector<8x128xf32> to vector<8xf32>
    %58 = vector.shape_cast %57 : vector<8xf32> to vector<8x1xf32>
    %59 = vector.broadcast %58 : vector<8x1xf32> to vector<8x128xf32>
    %60 = arith.cmpf oge, %56, %59 : vector<8x128xf32>
    %c128_i32_40 = arith.constant 128 : i32
    %61 = vector.shape_cast %0 : vector<1x128xi32> to vector<1x128xi32>
    %62 = vector.broadcast %61 : vector<1x128xi32> to vector<8x128xi32>
    %63 = vector.broadcast %c128_i32_40 : i32 to vector<8x128xi32>
    %64 = arith.select %60, %62, %63 : vector<8x128xi1>, vector<8x128xi32>
    %cst_41 = arith.constant dense<2147483647> : vector<8xi32>
    %65 = vector.multi_reduction <minsi>, %64, %cst_41 [1] : vector<8x128xi32> to vector<8xi32>
    %66 = vector.shape_cast %65 : vector<8xi32> to vector<8x1xi32>
    %67 = vector.broadcast %0 : vector<1x128xi32> to vector<8x128xi32>
    %68 = vector.broadcast %66 : vector<8x1xi32> to vector<8x128xi32>
    %69 = arith.cmpi eq, %67, %68 : vector<8x128xi32>
    %cst_42 = arith.constant 0.000000e+00 : f32
    %70 = vector.broadcast %cst_42 : f32 to vector<8x128xf32>
    %71 = arith.select %69, %55, %70 : vector<8x128xi1>, vector<8x128xf32>
    %c0_43 = arith.constant 0 : index
    %c0_44 = arith.constant 0 : index
    %72 = vector.load %arg4[%c0_43, %c0_44] : memref<8x128xf32, #tpu.memory_space<vmem>>, vector<8x128xf32>
    %73 = arith.addf %72, %71 : vector<8x128xf32>
    %c0_45 = arith.constant 0 : index
    %c0_46 = arith.constant 0 : index
    %74 = vector.load %arg4[%c0_45, %c0_46] : memref<8x128xf32, #tpu.memory_space<vmem>>, vector<8x128xf32>
    tpu.vector_store %arg4[%c0_45, %c0_46], %73 {strides = array<i32>} : memref<8x128xf32, #tpu.memory_space<vmem>>, vector<8x128xf32>,
    %c0_47 = arith.constant 0 : index
    %c0_48 = arith.constant 0 : index
    %75 = vector.load %arg3[%c0_47, %c0_48] : memref<128x128xf32, #tpu.memory_space<vmem>>, vector<128x128xf32>
    %cst_49 = arith.constant dense<0.000000e+00> : vector<8x128xf32>
    %76 = tpu.matmul %71, %75, %cst_49 {dimension_numbers = #tpu.dot_dimension_numbers<[1], [0], [0], [1], [0, 0, 1, 1], [], []>} : vector<8x128xf32>, vector<128x128xf32>, vector<8x128xf32> -> vector<8x128xf32>
    %77 = arith.subf %55, %76 : vector<8x128xf32>
    %c0_50 = arith.constant 0 : index
    %c0_51 = arith.constant 0 : index
    %78 = vector.load %arg6[%c0_50, %c0_51] : memref<8x128xf32, #tpu.memory_space<vmem>>, vector<8x128xf32>
    tpu.vector_store %arg6[%c0_50, %c0_51], %77 {strides = array<i32>} : memref<8x128xf32, #tpu.memory_space<vmem>>, vector<8x128xf32>,
    %c0_52 = arith.constant 0 : index
    %c0_53 = arith.constant 0 : index
    %79 = vector.load %arg6[%c0_52, %c0_53] : memref<8x128xf32, #tpu.memory_space<vmem>>, vector<8x128xf32>
    %80 = math.absf %79 : vector<8x128xf32>
    %cst_54 = arith.constant dense<0xFF800000> : vector<8xf32>
    %81 = vector.multi_reduction <maximumf>, %80, %cst_54 [1] : vector<8x128xf32> to vector<8xf32>
    %82 = vector.shape_cast %81 : vector<8xf32> to vector<8x1xf32>
    %83 = vector.broadcast %82 : vector<8x1xf32> to vector<8x128xf32>
    %84 = arith.cmpf oge, %80, %83 : vector<8x128xf32>
    %c128_i32_55 = arith.constant 128 : i32
    %85 = vector.shape_cast %0 : vector<1x128xi32> to vector<1x128xi32>
    %86 = vector.broadcast %85 : vector<1x128xi32> to vector<8x128xi32>
    %87 = vector.broadcast %c128_i32_55 : i32 to vector<8x128xi32>
    %88 = arith.select %84, %86, %87 : vector<8x128xi1>, vector<8x128xi32>
    %cst_56 = arith.constant dense<2147483647> : vector<8xi32>
    %89 = vector.multi_reduction <minsi>, %88, %cst_56 [1] : vector<8x128xi32> to vector<8xi32>
    %90 = vector.shape_cast %89 : vector<8xi32> to vector<8x1xi32>
    %91 = vector.broadcast %0 : vector<1x128xi32> to vector<8x128xi32>
    %92 = vector.broadcast %90 : vector<8x1xi32> to vector<8x128xi32>
    %93 = arith.cmpi eq, %91, %92 : vector<8x128xi32>
    %cst_57 = arith.constant 0.000000e+00 : f32
    %94 = vector.broadcast %cst_57 : f32 to vector<8x128xf32>
    %95 = arith.select %93, %79, %94 : vector<8x128xi1>, vector<8x128xf32>
    %c0_58 = arith.constant 0 : index
    %c0_59 = arith.constant 0 : index
    %96 = vector.load %arg4[%c0_58, %c0_59] : memref<8x128xf32, #tpu.memory_space<vmem>>, vector<8x128xf32>
    %97 = arith.addf %96, %95 : vector<8x128xf32>
    %c0_60 = arith.constant 0 : index
    %c0_61 = arith.constant 0 : index
    %98 = vector.load %arg4[%c0_60, %c0_61] : memref<8x128xf32, #tpu.memory_space<vmem>>, vector<8x128xf32>
    tpu.vector_store %arg4[%c0_60, %c0_61], %97 {strides = array<i32>} : memref<8x128xf32, #tpu.memory_space<vmem>>, vector<8x128xf32>,
    %c0_62 = arith.constant 0 : index
    %c0_63 = arith.constant 0 : index
    %99 = vector.load %arg4[%c0_62, %c0_63] : memref<8x128xf32, #tpu.memory_space<vmem>>, vector<8x128xf32>
    %c0_64 = arith.constant 0 : index
    %c0_65 = arith.constant 0 : index
    %100 = vector.load %arg2[%c0_64, %c0_65] : memref<128x128xf32, #tpu.memory_space<vmem>>, vector<128x128xf32>
    %cst_66 = arith.constant dense<0.000000e+00> : vector<8x128xf32>
    %101 = tpu.matmul %99, %100, %cst_66 {dimension_numbers = #tpu.dot_dimension_numbers<[1], [0], [0], [1], [0, 0, 1, 1], [], []>} : vector<8x128xf32>, vector<128x128xf32>, vector<8x128xf32> -> vector<8x128xf32>
    %c0_67 = arith.constant 0 : index
    %c0_68 = arith.constant 0 : index
    %102 = vector.load %arg5[%c0_67, %c0_68] : memref<8x128xf32, #tpu.memory_space<vmem>>, vector<8x128xf32>
    tpu.vector_store %arg5[%c0_67, %c0_68], %101 {strides = array<i32>} : memref<8x128xf32, #tpu.memory_space<vmem>>, vector<8x128xf32>,
    return
  }
  func.func @transform_0(%arg0: i32) -> (i32, i32) {
    %c0_i32 = arith.constant 0 : i32
    %c0_i32_0 = arith.constant 0 : i32
    return %arg0, %c0_i32 : i32, i32
  }
  func.func @transform_1(%arg0: i32) -> (i32, i32) {
    %c0_i32 = arith.constant 0 : i32
    %c0_i32_0 = arith.constant 0 : i32
    %c0_i32_1 = arith.constant 0 : i32
    return %c0_i32, %c0_i32_0 : i32, i32
  }
  func.func @transform_2(%arg0: i32) -> (i32, i32) {
    %c0_i32 = arith.constant 0 : i32
    %c0_i32_0 = arith.constant 0 : i32
    %c0_i32_1 = arith.constant 0 : i32
    return %c0_i32, %c0_i32_0 : i32, i32
  }
  func.func @transform_3(%arg0: i32) -> (i32, i32) {
    %c0_i32 = arith.constant 0 : i32
    %c0_i32_0 = arith.constant 0 : i32
    return %arg0, %c0_i32 : i32, i32
  }
  func.func @transform_4(%arg0: i32) -> (i32, i32) {
    %c0_i32 = arith.constant 0 : i32
    %c0_i32_0 = arith.constant 0 : i32
    return %arg0, %c0_i32 : i32, i32
  }
}

</mosaic_0001>

<llo_original>
// kernel: tpu_custom_call.1
$region0: #{tpu_custom_call.1}
  #allocation0 [shape = 'u32[]', space=smem, size = 0x4, offset = 0x4, fixed_abs, tag = 'smem constant byte address 0x4 - core index']
  #allocation1 [shape = 'u32[72,128]{1,0:T(1,128)}', space=vmem, size = 0x9000, scoped, tag = 'internal scratch']
  #allocation2 [shape = 'f32[8,128]{1,0:T(8,128)}', space=vmem, size = 0x1000, scoped, tag = 'scratch operand']
  %s0 = inlined_call_operand.hbm [shape: f32[8,128], index: 0, kind: input, shape index: {}]
  %s1 = inlined_call_operand.hbm [shape: f32[128,128], index: 1, kind: input, shape index: {}]
  %s2 = inlined_call_operand.hbm [shape: f32[128,128], index: 2, kind: input, shape index: {}]
  %s3 = inlined_call_operand.hbm [shape: f32[8,128], index: 3, kind: output, shape index: {0}]
  %s4 = inlined_call_operand.hbm [shape: f32[8,128], index: 4, kind: output, shape index: {1}]
  %5 = xla_tuple %s3, %s4
  %s6 = sld [smem:[#allocation0]]
  $region42: #{tpu_custom_call.1} parent=0
    _
  %s8 = ssub.s32 1, %s6
  %s9 = scalar_select 0, %s8, %s6
  $region1: #{tpu_custom_call.1} parent=0
    #allocation3 [shape = 'u8[4096]{0}', space=vmem, size = 0x1000, scoped, tag = 'input window, operand 0, single buffered']
    #allocation4 [shape = 's32[1]{0}', space=sflag, size = 0x4, scoped, tag = 'scoped memory for tpu_custom_call.1']
    #allocation5 [shape = 's32[1]{0}', space=sflag, size = 0x4, scoped, tag = 'scoped memory for tpu_custom_call.1']
    #allocation6 [shape = 'u8[65536]{0}', space=vmem, size = 0x10000, scoped, tag = 'input window, operand 1, single buffered']
    #allocation7 [shape = 's32[1]{0}', space=sflag, size = 0x4, scoped, tag = 'scoped memory for tpu_custom_call.1']
    #allocation8 [shape = 'u8[65536]{0}', space=vmem, size = 0x10000, scoped, tag = 'input window, operand 2, single buffered']
    #allocation9 [shape = 'u8[4096]{0}', space=vmem, size = 0x1000, scoped, tag = 'output window, operand 0, single buffered']
    #allocation10 [shape = 'u8[4096]{0}', space=vmem, size = 0x1000, scoped, tag = 'output window, operand 1, single buffered']
    #allocation11 [shape = 's32[1]{0}', space=sflag, size = 0x4, scoped, tag = 'scoped memory for tpu_custom_call.1']
    %10 = vsyncpa [#allocation4], 0
    %11 = vsyncpa [#allocation7], 0
    %12 = vsyncpa [#allocation5], 0
    %13 = vsyncpa [#allocation11], 0
    // Predicated region
    $region2: #{tpu_custom_call.1} parent=1 // pred_check
      _
    $region3: #{tpu_custom_call.1} parent=1 // pred_check_branch
      %15 = sbr.rel (0) target = $region5
    $region4: #{tpu_custom_call.1} parent=1 // pred_region
      %17 = vsyncadd [#allocation4], 0
      %s19 = sshll.u32 %s0, 4
      %s20 = int_to_ptr.hbm [resolvable:$true] %s19
      %s21 = sshll.u32 [#allocation3], 4
      %s22 = int_to_ptr.vmem [resolvable:$true] %s21
      %24 = dma.hbm_to_vmem [thread:$0]  %s20, 128, %s22, [#allocation4]
    $region5: #{tpu_custom_call.1} parent=1 // pred_fallthru
      _
    // Predicated region
    $region6: #{tpu_custom_call.1} parent=1 // pred_check
      _
    $region7: #{tpu_custom_call.1} parent=1 // pred_check_branch
      %26 = sbr.rel (0) target = $region9
    $region8: #{tpu_custom_call.1} parent=1 // pred_region
      %28 = vsyncadd [#allocation7], 0
      %s29 = sshll.u32 %s1, 4
      %s30 = int_to_ptr.hbm [resolvable:$true] %s29
      %s31 = sshll.u32 [#allocation6], 4
      %s32 = int_to_ptr.vmem [resolvable:$true] %s31
      %37 = dma.hbm_to_vmem [thread:$0]  %s30, 2048, %s32, [#allocation7], 128, 128, 8
    $region9: #{tpu_custom_call.1} parent=1 // pred_fallthru
      _
    // Predicated region
    $region10: #{tpu_custom_call.1} parent=1 // pred_check
      _
    $region11: #{tpu_custom_call.1} parent=1 // pred_check_branch
      %39 = sbr.rel (0) target = $region13
    $region12: #{tpu_custom_call.1} parent=1 // pred_region
      %41 = vsyncadd [#allocation7], 0
      %s42 = sshll.u32 %s2, 4
      %s43 = int_to_ptr.hbm [resolvable:$true] %s42
      %s44 = sshll.u32 [#allocation8], 4
      %s45 = int_to_ptr.vmem [resolvable:$true] %s44
      %50 = dma.hbm_to_vmem [thread:$0]  %s43, 2048, %s45, [#allocation7], 128, 128, 8
    $region13: #{tpu_custom_call.1} parent=1 // pred_fallthru
      _
    // Predicated region
    $region14: #{tpu_custom_call.1} parent=1 // pred_check
      _
    $region15: #{tpu_custom_call.1} parent=1 // pred_check_branch
      %52 = sbr.rel (0) target = $region17
    $region16: #{tpu_custom_call.1} parent=1 // pred_region
      %54 = dma.done [#allocation4], 128
    $region17: #{tpu_custom_call.1} parent=1 // pred_fallthru
      _
    // Predicated region
    $region18: #{tpu_custom_call.1} parent=1 // pred_check
      _
    $region19: #{tpu_custom_call.1} parent=1 // pred_check_branch
      %56 = sbr.rel (0) target = $region21
    $region20: #{tpu_custom_call.1} parent=1 // pred_region
      %58 = dma.done [#allocation7], 2048
    $region21: #{tpu_custom_call.1} parent=1 // pred_fallthru
      _
    // Predicated region
    $region22: #{tpu_custom_call.1} parent=1 // pred_check
      _
    $region23: #{tpu_custom_call.1} parent=1 // pred_check_branch
      %60 = sbr.rel (0) target = $region25
    $region24: #{tpu_custom_call.1} parent=1 // pred_region
      %62 = dma.done [#allocation7], 2048
    $region25: #{tpu_custom_call.1} parent=1 // pred_fallthru
      _
    %v63 = vlaneseq
    %v64 = vand.u32 %v63, 127
    %v65 = vld [vmem:[#allocation3] sm:$0xff]
    %v66 = vld [vmem:[#allocation6] sm:$0xff]
    %v67 = vld [vmem:[#allocation6 + $0x8] sm:$0xff]
    %v68 = vld [vmem:[#allocation6 + $0x10] sm:$0xff]
    %v69 = vld [vmem:[#allocation6 + $0x18] sm:$0xff]
    %v70 = vld [vmem:[#allocation6 + $0x20] sm:$0xff]
    %v71 = vld [vmem:[#allocation6 + $0x28] sm:$0xff]
    %v72 = vld [vmem:[#allocation6 + $0x30] sm:$0xff]
    %v73 = vld [vmem:[#allocation6 + $0x38] sm:$0xff]
    %v74 = vld [vmem:[#allocation6 + $0x40] sm:$0xff]
    %v75 = vld [vmem:[#allocation6 + $0x48] sm:$0xff]
    %v76 = vld [vmem:[#allocation6 + $0x50] sm:$0xff]
    %v77 = vld [vmem:[#allocation6 + $0x58] sm:$0xff]
    %v78 = vld [vmem:[#allocation6 + $0x60] sm:$0xff]
    %v79 = vld [vmem:[#allocation6 + $0x68] sm:$0xff]
    %v80 = vld [vmem:[#allocation6 + $0x70] sm:$0xff]
    %v81 = vld [vmem:[#allocation6 + $0x78] sm:$0xff]
    %82 = vmatpush.xpose.msra.mxu0 %v81
    %83 = vmatpush.xpose.msra.mxu0 %v80
    %84 = vmatpush.xpose.msra.mxu0 %v79
    %85 = vmatpush.xpose.msra.mxu0 %v78
    %86 = vmatpush.xpose.msra.mxu0 %v77
    %87 = vmatpush.xpose.msra.mxu0 %v76
    %88 = vmatpush.xpose.msra.mxu0 %v75
    %89 = vmatpush.xpose.msra.mxu0 %v74
    %90 = vmatpush.xpose.msra.mxu0 %v73
    %91 = vmatpush.xpose.msra.mxu0 %v72
    %92 = vmatpush.xpose.msra.mxu0 %v71
    %93 = vmatpush.xpose.msra.mxu0 %v70
    %94 = vmatpush.xpose.msra.mxu0 %v69
    %95 = vmatpush.xpose.msra.mxu0 %v68
    %96 = vmatpush.xpose.msra.mxu0 %v67
    %97 = vmatpush.xpose.msra.mxu0 %v66
    %98 = vmatmul.f32.gmra.mxu0 %v65
    %v99 = vpop.f32.mrf.mxu0
    %v100 = vadd.f32 0.0, %v99
    %101 = vdwg.mxu0
    %102 = vst [vmem:[#allocation2] sm:$0xff] %v100
    %103 = vst [vmem:[#allocation9] sm:$0xff] 0.0
    %v104 = vld [vmem:[#allocation2] sm:$0xff]
    %v105 = vand.u32 2147483647, %v104
    %106 = vmax.xlane.f32.xlu0 %v105
    %v107 = vpop.xlane.xlu0 %106
    %vm108 = vcmp.ge.f32.partialorder %v105, %v107
    %v109 = vsel %vm108, %v64, 128
    %v110 = vand.u32 %v109, 65535
    %v111 = vshra.s32 %v109, 16
    %v112 = vcvt.s32.f32 %v110
    %v113 = vcvt.s32.f32 %v111
    %114 = vmin.xlane.f32.xlu0 %v113
    %v115 = vpop.xlane.xlu0 %114
    %vm116 = vcmp.eq.f32.partialorder %v113, %v115
    %v117 = vsel %vm116, %v112, inf
    %118 = vmin.xlane.f32.xlu0 %v117
    %v119 = vpop.xlane.xlu0 %118
    %v120 = vcvt.f32.s32 %v119
    %v121 = vcvt.f32.s32 %v115
    %v122 = vshll.u32 %v121, 16
    %v123 = vadd.s32 %v122, %v120
    %vm124 = vcmp.eq.s32.totalorder %v64, %v123
    %v125 = vsel %vm124, %v104, 0.0
    %v126 = vld [vmem:[#allocation9] sm:$0xff]
    %v127 = vadd.f32 %v126, %v125
    %128 = vst [vmem:[#allocation9] sm:$0xff] %v127
    %v129 = vld [vmem:[#allocation8] sm:$0xff]
    %v130 = vld [vmem:[#allocation8 + $0x8] sm:$0xff]
    %v131 = vld [vmem:[#allocation8 + $0x10] sm:$0xff]
    %v132 = vld [vmem:[#allocation8 + $0x18] sm:$0xff]
    %v133 = vld [vmem:[#allocation8 + $0x20] sm:$0xff]
    %v134 = vld [vmem:[#allocation8 + $0x28] sm:$0xff]
    %v135 = vld [vmem:[#allocation8 + $0x30] sm:$0xff]
    %v136 = vld [vmem:[#allocation8 + $0x38] sm:$0xff]
    %v137 = vld [vmem:[#allocation8 + $0x40] sm:$0xff]
    %v138 = vld [vmem:[#allocation8 + $0x48] sm:$0xff]
    %v139 = vld [vmem:[#allocation8 + $0x50] sm:$0xff]
    %v140 = vld [vmem:[#allocation8 + $0x58] sm:$0xff]
    %v141 = vld [vmem:[#allocation8 + $0x60] sm:$0xff]
    %v142 = vld [vmem:[#allocation8 + $0x68] sm:$0xff]
    %v143 = vld [vmem:[#allocation8 + $0x70] sm:$0xff]
    %v144 = vld [vmem:[#allocation8 + $0x78] sm:$0xff]
    %145 = vmatpush.msra.mxu0 %v144
    %146 = vmatpush.msra.mxu0 %v143
    %147 = vmatpush.msra.mxu0 %v142
    %148 = vmatpush.msra.mxu0 %v141
    %149 = vmatpush.msra.mxu0 %v140
    %150 = vmatpush.msra.mxu0 %v139
    %151 = vmatpush.msra.mxu0 %v138
    %152 = vmatpush.msra.mxu0 %v137
    %153 = vmatpush.msra.mxu0 %v136
    %154 = vmatpush.msra.mxu0 %v135
    %155 = vmatpush.msra.mxu0 %v134
    %156 = vmatpush.msra.mxu0 %v133
    %157 = vmatpush.msra.mxu0 %v132
    %158 = vmatpush.msra.mxu0 %v131
    %159 = vmatpush.msra.mxu0 %v130
    %160 = vmatpush.msra.mxu0 %v129
    %161 = vmatmul.f32.gmra.mxu0 %v125
    %v162 = vpop.f32.mrf.mxu0
    %v163 = vadd.f32 0.0, %v162
    %164 = vdwg.mxu0
    %v165 = vsub.f32 %v104, %v163
    %166 = vst [vmem:[#allocation2] sm:$0xff] %v165
    %v167 = vld [vmem:[#allocation2] sm:$0xff]
    %v168 = vand.u32 2147483647, %v167
    %169 = vmax.xlane.f32.xlu0 %v168
    %v170 = vpop.xlane.xlu0 %169
    %vm171 = vcmp.ge.f32.partialorder %v168, %v170
    %v172 = vsel %vm171, %v64, 128
    %v173 = vand.u32 %v172, 65535
    %v174 = vshra.s32 %v172, 16
    %v175 = vcvt.s32.f32 %v173
    %v176 = vcvt.s32.f32 %v174
    %177 = vmin.xlane.f32.xlu0 %v176
    %v178 = vpop.xlane.xlu0 %177
    %vm179 = vcmp.eq.f32.partialorder %v176, %v178
    %v180 = vsel %vm179, %v175, inf
    %181 = vmin.xlane.f32.xlu0 %v180
    %v182 = vpop.xlane.xlu0 %181
    %v183 = vcvt.f32.s32 %v182
    %v184 = vcvt.f32.s32 %v178
    %v185 = vshll.u32 %v184, 16
    %v186 = vadd.s32 %v185, %v183
    %vm187 = vcmp.eq.s32.totalorder %v64, %v186
    %v188 = vsel %vm187, %v167, 0.0
    %v189 = vld [vmem:[#allocation9] sm:$0xff]
    %v190 = vadd.f32 %v189, %v188
    %191 = vst [vmem:[#allocation9] sm:$0xff] %v190
    %v192 = vld [vmem:[#allocation8] sm:$0xff]
    %v193 = vld [vmem:[#allocation8 + $0x8] sm:$0xff]
    %v194 = vld [vmem:[#allocation8 + $0x10] sm:$0xff]
    %v195 = vld [vmem:[#allocation8 + $0x18] sm:$0xff]
    %v196 = vld [vmem:[#allocation8 + $0x20] sm:$0xff]
    %v197 = vld [vmem:[#allocation8 + $0x28] sm:$0xff]
    %v198 = vld [vmem:[#allocation8 + $0x30] sm:$0xff]
    %v199 = vld [vmem:[#allocation8 + $0x38] sm:$0xff]
    %v200 = vld [vmem:[#allocation8 + $0x40] sm:$0xff]
    %v201 = vld [vmem:[#allocation8 + $0x48] sm:$0xff]
    %v202 = vld [vmem:[#allocation8 + $0x50] sm:$0xff]
    %v203 = vld [vmem:[#allocation8 + $0x58] sm:$0xff]
    %v204 = vld [vmem:[#allocation8 + $0x60] sm:$0xff]
    %v205 = vld [vmem:[#allocation8 + $0x68] sm:$0xff]
    %v206 = vld [vmem:[#allocation8 + $0x70] sm:$0xff]
    %v207 = vld [vmem:[#allocation8 + $0x78] sm:$0xff]
    %208 = vmatpush.msra.mxu0 %v207
    %209 = vmatpush.msra.mxu0 %v206
    %210 = vmatpush.msra.mxu0 %v205
    %211 = vmatpush.msra.mxu0 %v204
    %212 = vmatpush.msra.mxu0 %v203
    %213 = vmatpush.msra.mxu0 %v202
    %214 = vmatpush.msra.mxu0 %v201
    %215 = vmatpush.msra.mxu0 %v200
    %216 = vmatpush.msra.mxu0 %v199
    %217 = vmatpush.msra.mxu0 %v198
    %218 = vmatpush.msra.mxu0 %v197
    %219 = vmatpush.msra.mxu0 %v196
    %220 = vmatpush.msra.mxu0 %v195
    %221 = vmatpush.msra.mxu0 %v194
    %222 = vmatpush.msra.mxu0 %v193
    %223 = vmatpush.msra.mxu0 %v192
    %224 = vmatmul.f32.gmra.mxu0 %v188
    %v225 = vpop.f32.mrf.mxu0
    %v226 = vadd.f32 0.0, %v225
    %227 = vdwg.mxu0
    %v228 = vsub.f32 %v167, %v226
    %229 = vst [vmem:[#allocation2] sm:$0xff] %v228
    %v230 = vld [vmem:[#allocation2] sm:$0xff]
    %v231 = vand.u32 2147483647, %v230
    %232 = vmax.xlane.f32.xlu0 %v231
    %v233 = vpop.xlane.xlu0 %232
    %vm234 = vcmp.ge.f32.partialorder %v231, %v233
    %v235 = vsel %vm234, %v64, 128
    %v236 = vand.u32 %v235, 65535
    %v237 = vshra.s32 %v235, 16
    %v238 = vcvt.s32.f32 %v236
    %v239 = vcvt.s32.f32 %v237
    %240 = vmin.xlane.f32.xlu0 %v239
    %v241 = vpop.xlane.xlu0 %240
    %vm242 = vcmp.eq.f32.partialorder %v239, %v241
    %v243 = vsel %vm242, %v238, inf
    %244 = vmin.xlane.f32.xlu0 %v243
    %v245 = vpop.xlane.xlu0 %244
    %v246 = vcvt.f32.s32 %v245
    %v247 = vcvt.f32.s32 %v241
    %v248 = vshll.u32 %v247, 16
    %v249 = vadd.s32 %v248, %v246
    %vm250 = vcmp.eq.s32.totalorder %v64, %v249
    %v251 = vsel %vm250, %v230, 0.0
    %v252 = vld [vmem:[#allocation9] sm:$0xff]
    %v253 = vadd.f32 %v252, %v251
    %254 = vst [vmem:[#allocation9] sm:$0xff] %v253
    %v255 = vld [vmem:[#allocation8] sm:$0xff]
    %v256 = vld [vmem:[#allocation8 + $0x8] sm:$0xff]
    %v257 = vld [vmem:[#allocation8 + $0x10] sm:$0xff]
    %v258 = vld [vmem:[#allocation8 + $0x18] sm:$0xff]
    %v259 = vld [vmem:[#allocation8 + $0x20] sm:$0xff]
    %v260 = vld [vmem:[#allocation8 + $0x28] sm:$0xff]
    %v261 = vld [vmem:[#allocation8 + $0x30] sm:$0xff]
    %v262 = vld [vmem:[#allocation8 + $0x38] sm:$0xff]
    %v263 = vld [vmem:[#allocation8 + $0x40] sm:$0xff]
    %v264 = vld [vmem:[#allocation8 + $0x48] sm:$0xff]
    %v265 = vld [vmem:[#allocation8 + $0x50] sm:$0xff]
    %v266 = vld [vmem:[#allocation8 + $0x58] sm:$0xff]
    %v267 = vld [vmem:[#allocation8 + $0x60] sm:$0xff]
    %v268 = vld [vmem:[#allocation8 + $0x68] sm:$0xff]
    %v269 = vld [vmem:[#allocation8 + $0x70] sm:$0xff]
    %v270 = vld [vmem:[#allocation8 + $0x78] sm:$0xff]
    %271 = vmatpush.msra.mxu0 %v270
    %272 = vmatpush.msra.mxu0 %v269
    %273 = vmatpush.msra.mxu0 %v268
    %274 = vmatpush.msra.mxu0 %v267
    %275 = vmatpush.msra.mxu0 %v266
    %276 = vmatpush.msra.mxu0 %v265
    %277 = vmatpush.msra.mxu0 %v264
    %278 = vmatpush.msra.mxu0 %v263
    %279 = vmatpush.msra.mxu0 %v262
    %280 = vmatpush.msra.mxu0 %v261
    %281 = vmatpush.msra.mxu0 %v260
    %282 = vmatpush.msra.mxu0 %v259
    %283 = vmatpush.msra.mxu0 %v258
    %284 = vmatpush.msra.mxu0 %v257
    %285 = vmatpush.msra.mxu0 %v256
    %286 = vmatpush.msra.mxu0 %v255
    %287 = vmatmul.f32.gmra.mxu0 %v251
    %v288 = vpop.f32.mrf.mxu0
    %v289 = vadd.f32 0.0, %v288
    %290 = vdwg.mxu0
    %v291 = vsub.f32 %v230, %v289
    %292 = vst [vmem:[#allocation2] sm:$0xff] %v291
    %v293 = vld [vmem:[#allocation2] sm:$0xff]
    %v294 = vand.u32 2147483647, %v293
    %295 = vmax.xlane.f32.xlu0 %v294
    %v296 = vpop.xlane.xlu0 %295
    %vm297 = vcmp.ge.f32.partialorder %v294, %v296
    %v298 = vsel %vm297, %v64, 128
    %v299 = vand.u32 %v298, 65535
    %v300 = vshra.s32 %v298, 16
    %v301 = vcvt.s32.f32 %v299
    %v302 = vcvt.s32.f32 %v300
    %303 = vmin.xlane.f32.xlu0 %v302
    %v304 = vpop.xlane.xlu0 %303
    %vm305 = vcmp.eq.f32.partialorder %v302, %v304
    %v306 = vsel %vm305, %v301, inf
    %307 = vmin.xlane.f32.xlu0 %v306
    %v308 = vpop.xlane.xlu0 %307
    %v309 = vcvt.f32.s32 %v308
    %v310 = vcvt.f32.s32 %v304
    %v311 = vshll.u32 %v310, 16
    %v312 = vadd.s32 %v311, %v309
    %vm313 = vcmp.eq.s32.totalorder %v64, %v312
    %v314 = vsel %vm313, %v293, 0.0
    %v315 = vld [vmem:[#allocation9] sm:$0xff]
    %v316 = vadd.f32 %v315, %v314
    %317 = vst [vmem:[#allocation9] sm:$0xff] %v316
    %v318 = vld [vmem:[#allocation9] sm:$0xff]
    %v319 = vld [vmem:[#allocation6] sm:$0xff]
    %v320 = vld [vmem:[#allocation6 + $0x8] sm:$0xff]
    %v321 = vld [vmem:[#allocation6 + $0x10] sm:$0xff]
    %v322 = vld [vmem:[#allocation6 + $0x18] sm:$0xff]
    %v323 = vld [vmem:[#allocation6 + $0x20] sm:$0xff]
    %v324 = vld [vmem:[#allocation6 + $0x28] sm:$0xff]
    %v325 = vld [vmem:[#allocation6 + $0x30] sm:$0xff]
    %v326 = vld [vmem:[#allocation6 + $0x38] sm:$0xff]
    %v327 = vld [vmem:[#allocation6 + $0x40] sm:$0xff]
    %v328 = vld [vmem:[#allocation6 + $0x48] sm:$0xff]
    %v329 = vld [vmem:[#allocation6 + $0x50] sm:$0xff]
    %v330 = vld [vmem:[#allocation6 + $0x58] sm:$0xff]
    %v331 = vld [vmem:[#allocation6 + $0x60] sm:$0xff]
    %v332 = vld [vmem:[#allocation6 + $0x68] sm:$0xff]
    %v333 = vld [vmem:[#allocation6 + $0x70] sm:$0xff]
    %v334 = vld [vmem:[#allocation6 + $0x78] sm:$0xff]
    %335 = vmatpush.msra.mxu0 %v334
    %336 = vmatpush.msra.mxu0 %v333
    %337 = vmatpush.msra.mxu0 %v332
    %338 = vmatpush.msra.mxu0 %v331
    %339 = vmatpush.msra.mxu0 %v330
    %340 = vmatpush.msra.mxu0 %v329
    %341 = vmatpush.msra.mxu0 %v328
    %342 = vmatpush.msra.mxu0 %v327
    %343 = vmatpush.msra.mxu0 %v326
    %344 = vmatpush.msra.mxu0 %v325
    %345 = vmatpush.msra.mxu0 %v324
    %346 = vmatpush.msra.mxu0 %v323
    %347 = vmatpush.msra.mxu0 %v322
    %348 = vmatpush.msra.mxu0 %v321
    %349 = vmatpush.msra.mxu0 %v320
    %350 = vmatpush.msra.mxu0 %v319
    %351 = vmatmul.f32.gmra.mxu0 %v318
    %v352 = vpop.f32.mrf.mxu0
    %v353 = vadd.f32 0.0, %v352
    %354 = vdwg.mxu0
    %355 = vst [vmem:[#allocation10] sm:$0xff] %v353
    // Predicated region
    $region26: #{tpu_custom_call.1} parent=1 // pred_check
      _
    $region27: #{tpu_custom_call.1} parent=1 // pred_check_branch
      %357 = sbr.rel (0) target = $region29
    $region28: #{tpu_custom_call.1} parent=1 // pred_region
      %359 = vsyncadd [#allocation5], 0
      %s361 = sshll.u32 [#allocation9], 4
      %s362 = int_to_ptr.vmem [resolvable:$true] %s361
      %s363 = sshll.u32 %s3, 4
      %s364 = int_to_ptr.hbm [resolvable:$true] %s363
      %366 = dma.vmem_to_hbm [thread:$0]  %s362, 128, %s364, [#allocation5]
    $region29: #{tpu_custom_call.1} parent=1 // pred_fallthru
      _
    // Predicated region
    $region30: #{tpu_custom_call.1} parent=1 // pred_check
      _
    $region31: #{tpu_custom_call.1} parent=1 // pred_check_branch
      %368 = sbr.rel (0) target = $region33
    $region32: #{tpu_custom_call.1} parent=1 // pred_region
      %370 = vsyncadd [#allocation11], 0
      %s372 = sshll.u32 [#allocation10], 4
      %s373 = int_to_ptr.vmem [resolvable:$true] %s372
      %s374 = sshll.u32 %s4, 4
      %s375 = int_to_ptr.hbm [resolvable:$true] %s374
      %377 = dma.vmem_to_hbm [thread:$0]  %s373, 128, %s375, [#allocation11]
    $region33: #{tpu_custom_call.1} parent=1 // pred_fallthru
      _
    // Predicated region
    $region34: #{tpu_custom_call.1} parent=1 // pred_check
      _
    $region35: #{tpu_custom_call.1} parent=1 // pred_check_branch
      %379 = sbr.rel (0) target = $region37
    $region36: #{tpu_custom_call.1} parent=1 // pred_region
      %381 = dma.done [#allocation5], 128
    $region37: #{tpu_custom_call.1} parent=1 // pred_fallthru
      _
    // Predicated region
    $region38: #{tpu_custom_call.1} parent=1 // pred_check
      _
    $region39: #{tpu_custom_call.1} parent=1 // pred_check_branch
      %383 = sbr.rel (0) target = $region41
    $region40: #{tpu_custom_call.1} parent=1 // pred_region
      %385 = dma.done [#allocation11], 128
    $region41: #{tpu_custom_call.1} parent=1 // pred_fallthru
      _
    %386 = vsyncpa [#allocation4], 1
    %387 = vsyncpa [#allocation7], 1
    %388 = vsyncpa [#allocation5], 1
    %389 = vsyncpa [#allocation11], 1

// kernel: tpu_custom_call.1
$region0: #{tpu_custom_call.1}
  #allocation0 [shape = 'u32[]', space=smem, size = 0x4, offset = 0x4, fixed_abs, tag = 'smem constant byte address 0x4 - core index']
  #allocation1 [shape = 'u32[72,128]{1,0:T(1,128)}', space=vmem, size = 0x9000, scoped, tag = 'internal scratch']
  #allocation2 [shape = 'f32[8,128]{1,0:T(8,128)}', space=vmem, size = 0x1000, scoped, tag = 'scratch operand']
  %s0 = inlined_call_operand.hbm [shape: f32[8,128], index: 0, kind: input, shape index: {}]
  %s1 = inlined_call_operand.hbm [shape: f32[128,128], index: 1, kind: input, shape index: {}]
  %s2 = inlined_call_operand.hbm [shape: f32[128,128], index: 2, kind: input, shape index: {}]
  %s3 = inlined_call_operand.hbm [shape: f32[8,128], index: 3, kind: output, shape index: {0}]
  %s4 = inlined_call_operand.hbm [shape: f32[8,128], index: 4, kind: output, shape index: {1}]
  %5 = xla_tuple %s3, %s4
  %s6 = sld [smem:[#allocation0]]
  $region42: #{tpu_custom_call.1} parent=0
    _
  %s8 = ssub.s32 1, %s6
  %s9 = scalar_select 0, %s8, %s6
  $region1: #{tpu_custom_call.1} parent=0
    #allocation3 [shape = 'u8[4096]{0}', space=vmem, size = 0x1000, scoped, tag = 'input window, operand 0, single buffered']
    #allocation4 [shape = 's32[1]{0}', space=sflag, size = 0x4, scoped, tag = 'scoped memory for tpu_custom_call.1']
    #allocation5 [shape = 's32[1]{0}', space=sflag, size = 0x4, scoped, tag = 'scoped memory for tpu_custom_call.1']
    #allocation6 [shape = 'u8[65536]{0}', space=vmem, size = 0x10000, scoped, tag = 'input window, operand 1, single buffered']
    #allocation7 [shape = 's32[1]{0}', space=sflag, size = 0x4, scoped, tag = 'scoped memory for tpu_custom_call.1']
    #allocation8 [shape = 'u8[65536]{0}', space=vmem, size = 0x10000, scoped, tag = 'input window, operand 2, single buffered']
    #allocation9 [shape = 'u8[4096]{0}', space=vmem, size = 0x1000, scoped, tag = 'output window, operand 0, single buffered']
    #allocation10 [shape = 'u8[4096]{0}', space=vmem, size = 0x1000, scoped, tag = 'output window, operand 1, single buffered']
    #allocation11 [shape = 's32[1]{0}', space=sflag, size = 0x4, scoped, tag = 'scoped memory for tpu_custom_call.1']
    %10 = vsyncpa [#allocation4], 0
    %11 = vsyncpa [#allocation7], 0
    %12 = vsyncpa [#allocation5], 0
    %13 = vsyncpa [#allocation11], 0
    // Predicated region
    $region2: #{tpu_custom_call.1} parent=1 // pred_check
      _
    $region3: #{tpu_custom_call.1} parent=1 // pred_check_branch
      %15 = sbr.rel (0) target = $region5
    $region4: #{tpu_custom_call.1} parent=1 // pred_region
      %17 = vsyncadd [#allocation4], 0
      %s19 = sshll.u32 %s0, 4
      %s20 = int_to_ptr.hbm [resolvable:$true] %s19
      %s21 = sshll.u32 [#allocation3], 4
      %s22 = int_to_ptr.vmem [resolvable:$true] %s21
      %24 = dma.hbm_to_vmem [thread:$0]  %s20, 128, %s22, [#allocation4]
    $region5: #{tpu_custom_call.1} parent=1 // pred_fallthru
      _
    // Predicated region
    $region6: #{tpu_custom_call.1} parent=1 // pred_check
      _
    $region7: #{tpu_custom_call.1} parent=1 // pred_check_branch
      %26 = sbr.rel (0) target = $region9
    $region8: #{tpu_custom_call.1} parent=1 // pred_region
      %28 = vsyncadd [#allocation7], 0
      %s29 = sshll.u32 %s1, 4
      %s30 = int_to_ptr.hbm [resolvable:$true] %s29
      %s31 = sshll.u32 [#allocation6], 4
      %s32 = int_to_ptr.vmem [resolvable:$true] %s31
      %37 = dma.hbm_to_vmem [thread:$0]  %s30, 2048, %s32, [#allocation7], 128, 128, 8
    $region9: #{tpu_custom_call.1} parent=1 // pred_fallthru
      _
    // Predicated region
    $region10: #{tpu_custom_call.1} parent=1 // pred_check
      _
    $region11: #{tpu_custom_call.1} parent=1 // pred_check_branch
      %39 = sbr.rel (0) target = $region13
    $region12: #{tpu_custom_call.1} parent=1 // pred_region
      %41 = vsyncadd [#allocation7], 0
      %s42 = sshll.u32 %s2, 4
      %s43 = int_to_ptr.hbm [resolvable:$true] %s42
      %s44 = sshll.u32 [#allocation8], 4
      %s45 = int_to_ptr.vmem [resolvable:$true] %s44
      %50 = dma.hbm_to_vmem [thread:$0]  %s43, 2048, %s45, [#allocation7], 128, 128, 8
    $region13: #{tpu_custom_call.1} parent=1 // pred_fallthru
      _
    // Predicated region
    $region14: #{tpu_custom_call.1} parent=1 // pred_check
      _
    $region15: #{tpu_custom_call.1} parent=1 // pred_check_branch
      %52 = sbr.rel (0) target = $region17
    $region16: #{tpu_custom_call.1} parent=1 // pred_region
      %54 = dma.done [#allocation4], 128
    $region17: #{tpu_custom_call.1} parent=1 // pred_fallthru
      _
    // Predicated region
    $region18: #{tpu_custom_call.1} parent=1 // pred_check
      _
    $region19: #{tpu_custom_call.1} parent=1 // pred_check_branch
      %56 = sbr.rel (0) target = $region21
    $region20: #{tpu_custom_call.1} parent=1 // pred_region
      %58 = dma.done [#allocation7], 2048
    $region21: #{tpu_custom_call.1} parent=1 // pred_fallthru
      _
    // Predicated region
    $region22: #{tpu_custom_call.1} parent=1 // pred_check
      _
    $region23: #{tpu_custom_call.1} parent=1 // pred_check_branch
      %60 = sbr.rel (0) target = $region25
    $region24: #{tpu_custom_call.1} parent=1 // pred_region
      %62 = dma.done [#allocation7], 2048
    $region25: #{tpu_custom_call.1} parent=1 // pred_fallthru
      _
    %v63 = vlaneseq
    %v64 = vand.u32 %v63, 127
    %v65 = vld [vmem:[#allocation3] sm:$0xff]
    %v66 = vld [vmem:[#allocation6] sm:$0xff]
    %v67 = vld [vmem:[#allocation6 + $0x8] sm:$0xff]
    %v68 = vld [vmem:[#allocation6 + $0x10] sm:$0xff]
    %v69 = vld [vmem:[#allocation6 + $0x18] sm:$0xff]
    %v70 = vld [vmem:[#allocation6 + $0x20] sm:$0xff]
    %v71 = vld [vmem:[#allocation6 + $0x28] sm:$0xff]
    %v72 = vld [vmem:[#allocation6 + $0x30] sm:$0xff]
    %v73 = vld [vmem:[#allocation6 + $0x38] sm:$0xff]
    %v74 = vld [vmem:[#allocation6 + $0x40] sm:$0xff]
    %v75 = vld [vmem:[#allocation6 + $0x48] sm:$0xff]
    %v76 = vld [vmem:[#allocation6 + $0x50] sm:$0xff]
    %v77 = vld [vmem:[#allocation6 + $0x58] sm:$0xff]
    %v78 = vld [vmem:[#allocation6 + $0x60] sm:$0xff]
    %v79 = vld [vmem:[#allocation6 + $0x68] sm:$0xff]
    %v80 = vld [vmem:[#allocation6 + $0x70] sm:$0xff]
    %v81 = vld [vmem:[#allocation6 + $0x78] sm:$0xff]
    %82 = vmatpush.xpose.msra.mxu0 %v81
    %83 = vmatpush.xpose.msra.mxu0 %v80
    %84 = vmatpush.xpose.msra.mxu0 %v79
    %85 = vmatpush.xpose.msra.mxu0 %v78
    %86 = vmatpush.xpose.msra.mxu0 %v77
    %87 = vmatpush.xpose.msra.mxu0 %v76
    %88 = vmatpush.xpose.msra.mxu0 %v75
    %89 = vmatpush.xpose.msra.mxu0 %v74
    %90 = vmatpush.xpose.msra.mxu0 %v73
    %91 = vmatpush.xpose.msra.mxu0 %v72
    %92 = vmatpush.xpose.msra.mxu0 %v71
    %93 = vmatpush.xpose.msra.mxu0 %v70
    %94 = vmatpush.xpose.msra.mxu0 %v69
    %95 = vmatpush.xpose.msra.mxu0 %v68
    %96 = vmatpush.xpose.msra.mxu0 %v67
    %97 = vmatpush.xpose.msra.mxu0 %v66
    %98 = vmatmul.f32.gmra.mxu0 %v65
    %v99 = vpop.f32.mrf.mxu0
    %v100 = vadd.f32 0.0, %v99
    %101 = vdwg.mxu0
    %102 = vst [vmem:[#allocation2] sm:$0xff] %v100
    %103 = vst [vmem:[#allocation9] sm:$0xff] 0.0
    %v104 = vld [vmem:[#allocation2] sm:$0xff]
    %v105 = vand.u32 2147483647, %v104
    %106 = vmax.xlane.f32.xlu0 %v105
    %v107 = vpop.xlane.xlu0 %106
    %vm108 = vcmp.ge.f32.partialorder %v105, %v107
    %v109 = vsel %vm108, %v64, 128
    %v110 = vand.u32 %v109, 65535
    %v111 = vshra.s32 %v109, 16
    %v112 = vcvt.s32.f32 %v110
    %v113 = vcvt.s32.f32 %v111
    %114 = vmin.xlane.f32.xlu0 %v113
    %v115 = vpop.xlane.xlu0 %114
    %vm116 = vcmp.eq.f32.partialorder %v113, %v115
    %v117 = vsel %vm116, %v112, inf
    %118 = vmin.xlane.f32.xlu0 %v117
    %v119 = vpop.xlane.xlu0 %118
    %v120 = vcvt.f32.s32 %v119
    %v121 = vcvt.f32.s32 %v115
    %v122 = vshll.u32 %v121, 16
    %v123 = vadd.s32 %v122, %v120
    %vm124 = vcmp.eq.s32.totalorder %v64, %v123
    %v125 = vsel %vm124, %v104, 0.0
    %v126 = vld [vmem:[#allocation9] sm:$0xff]
    %v127 = vadd.f32 %v126, %v125
    %128 = vst [vmem:[#allocation9] sm:$0xff] %v127
    %v129 = vld [vmem:[#allocation8] sm:$0xff]
    %v130 = vld [vmem:[#allocation8 + $0x8] sm:$0xff]
    %v131 = vld [vmem:[#allocation8 + $0x10] sm:$0xff]
    %v132 = vld [vmem:[#allocation8 + $0x18] sm:$0xff]
    %v133 = vld [vmem:[#allocation8 + $0x20] sm:$0xff]
    %v134 = vld [vmem:[#allocation8 + $0x28] sm:$0xff]
    %v135 = vld [vmem:[#allocation8 + $0x30] sm:$0xff]
    %v136 = vld [vmem:[#allocation8 + $0x38] sm:$0xff]
    %v137 = vld [vmem:[#allocation8 + $0x40] sm:$0xff]
    %v138 = vld [vmem:[#allocation8 + $0x48] sm:$0xff]
    %v139 = vld [vmem:[#allocation8 + $0x50] sm:$0xff]
    %v140 = vld [vmem:[#allocation8 + $0x58] sm:$0xff]
    %v141 = vld [vmem:[#allocation8 + $0x60] sm:$0xff]
    %v142 = vld [vmem:[#allocation8 + $0x68] sm:$0xff]
    %v143 = vld [vmem:[#allocation8 + $0x70] sm:$0xff]
    %v144 = vld [vmem:[#allocation8 + $0x78] sm:$0xff]
    %145 = vmatpush.msra.mxu0 %v144
    %146 = vmatpush.msra.mxu0 %v143
    %147 = vmatpush.msra.mxu0 %v142
    %148 = vmatpush.msra.mxu0 %v141
    %149 = vmatpush.msra.mxu0 %v140
    %150 = vmatpush.msra.mxu0 %v139
    %151 = vmatpush.msra.mxu0 %v138
    %152 = vmatpush.msra.mxu0 %v137
    %153 = vmatpush.msra.mxu0 %v136
    %154 = vmatpush.msra.mxu0 %v135
    %155 = vmatpush.msra.mxu0 %v134
    %156 = vmatpush.msra.mxu0 %v133
    %157 = vmatpush.msra.mxu0 %v132
    %158 = vmatpush.msra.mxu0 %v131
    %159 = vmatpush.msra.mxu0 %v130
    %160 = vmatpush.msra.mxu0 %v129
    %161 = vmatmul.f32.gmra.mxu0 %v125
    %v162 = vpop.f32.mrf.mxu0
    %v163 = vadd.f32 0.0, %v162
    %164 = vdwg.mxu0
    %v165 = vsub.f32 %v104, %v163
    %166 = vst [vmem:[#allocation2] sm:$0xff] %v165
    %v167 = vld [vmem:[#allocation2] sm:$0xff]
    %v168 = vand.u32 2147483647, %v167
    %169 = vmax.xlane.f32.xlu0 %v168
    %v170 = vpop.xlane.xlu0 %169
    %vm171 = vcmp.ge.f32.partialorder %v168, %v170
    %v172 = vsel %vm171, %v64, 128
    %v173 = vand.u32 %v172, 65535
    %v174 = vshra.s32 %v172, 16
    %v175 = vcvt.s32.f32 %v173
    %v176 = vcvt.s32.f32 %v174
    %177 = vmin.xlane.f32.xlu0 %v176
    %v178 = vpop.xlane.xlu0 %177
    %vm179 = vcmp.eq.f32.partialorder %v176, %v178
    %v180 = vsel %vm179, %v175, inf
    %181 = vmin.xlane.f32.xlu0 %v180
    %v182 = vpop.xlane.xlu0 %181
    %v183 = vcvt.f32.s32 %v182
    %v184 = vcvt.f32.s32 %v178
    %v185 = vshll.u32 %v184, 16
    %v186 = vadd.s32 %v185, %v183
    %vm187 = vcmp.eq.s32.totalorder %v64, %v186
    %v188 = vsel %vm187, %v167, 0.0
    %v189 = vld [vmem:[#allocation9] sm:$0xff]
    %v190 = vadd.f32 %v189, %v188
    %191 = vst [vmem:[#allocation9] sm:$0xff] %v190
    %v192 = vld [vmem:[#allocation8] sm:$0xff]
    %v193 = vld [vmem:[#allocation8 + $0x8] sm:$0xff]
    %v194 = vld [vmem:[#allocation8 + $0x10] sm:$0xff]
    %v195 = vld [vmem:[#allocation8 + $0x18] sm:$0xff]
    %v196 = vld [vmem:[#allocation8 + $0x20] sm:$0xff]
    %v197 = vld [vmem:[#allocation8 + $0x28] sm:$0xff]
    %v198 = vld [vmem:[#allocation8 + $0x30] sm:$0xff]
    %v199 = vld [vmem:[#allocation8 + $0x38] sm:$0xff]
    %v200 = vld [vmem:[#allocation8 + $0x40] sm:$0xff]
    %v201 = vld [vmem:[#allocation8 + $0x48] sm:$0xff]
    %v202 = vld [vmem:[#allocation8 + $0x50] sm:$0xff]
    %v203 = vld [vmem:[#allocation8 + $0x58] sm:$0xff]
    %v204 = vld [vmem:[#allocation8 + $0x60] sm:$0xff]
    %v205 = vld [vmem:[#allocation8 + $0x68] sm:$0xff]
    %v206 = vld [vmem:[#allocation8 + $0x70] sm:$0xff]
    %v207 = vld [vmem:[#allocation8 + $0x78] sm:$0xff]
    %208 = vmatpush.msra.mxu0 %v207
    %209 = vmatpush.msra.mxu0 %v206
    %210 = vmatpush.msra.mxu0 %v205
    %211 = vmatpush.msra.mxu0 %v204
    %212 = vmatpush.msra.mxu0 %v203
    %213 = vmatpush.msra.mxu0 %v202
    %214 = vmatpush.msra.mxu0 %v201
    %215 = vmatpush.msra.mxu0 %v200
    %216 = vmatpush.msra.mxu0 %v199
    %217 = vmatpush.msra.mxu0 %v198
    %218 = vmatpush.msra.mxu0 %v197
    %219 = vmatpush.msra.mxu0 %v196
    %220 = vmatpush.msra.mxu0 %v195
    %221 = vmatpush.msra.mxu0 %v194
    %222 = vmatpush.msra.mxu0 %v193
    %223 = vmatpush.msra.mxu0 %v192
    %224 = vmatmul.f32.gmra.mxu0 %v188
    %v225 = vpop.f32.mrf.mxu0
    %v226 = vadd.f32 0.0, %v225
    %227 = vdwg.mxu0
    %v228 = vsub.f32 %v167, %v226
    %229 = vst [vmem:[#allocation2] sm:$0xff] %v228
    %v230 = vld [vmem:[#allocation2] sm:$0xff]
    %v231 = vand.u32 2147483647, %v230
    %232 = vmax.xlane.f32.xlu0 %v231
    %v233 = vpop.xlane.xlu0 %232
    %vm234 = vcmp.ge.f32.partialorder %v231, %v233
    %v235 = vsel %vm234, %v64, 128
    %v236 = vand.u32 %v235, 65535
    %v237 = vshra.s32 %v235, 16
    %v238 = vcvt.s32.f32 %v236
    %v239 = vcvt.s32.f32 %v237
    %240 = vmin.xlane.f32.xlu0 %v239
    %v241 = vpop.xlane.xlu0 %240
    %vm242 = vcmp.eq.f32.partialorder %v239, %v241
    %v243 = vsel %vm242, %v238, inf
    %244 = vmin.xlane.f32.xlu0 %v243
    %v245 = vpop.xlane.xlu0 %244
    %v246 = vcvt.f32.s32 %v245
    %v247 = vcvt.f32.s32 %v241
    %v248 = vshll.u32 %v247, 16
    %v249 = vadd.s32 %v248, %v246
    %vm250 = vcmp.eq.s32.totalorder %v64, %v249
    %v251 = vsel %vm250, %v230, 0.0
    %v252 = vld [vmem:[#allocation9] sm:$0xff]
    %v253 = vadd.f32 %v252, %v251
    %254 = vst [vmem:[#allocation9] sm:$0xff] %v253
    %v255 = vld [vmem:[#allocation8] sm:$0xff]
    %v256 = vld [vmem:[#allocation8 + $0x8] sm:$0xff]
    %v257 = vld [vmem:[#allocation8 + $0x10] sm:$0xff]
    %v258 = vld [vmem:[#allocation8 + $0x18] sm:$0xff]
    %v259 = vld [vmem:[#allocation8 + $0x20] sm:$0xff]
    %v260 = vld [vmem:[#allocation8 + $0x28] sm:$0xff]
    %v261 = vld [vmem:[#allocation8 + $0x30] sm:$0xff]
    %v262 = vld [vmem:[#allocation8 + $0x38] sm:$0xff]
    %v263 = vld [vmem:[#allocation8 + $0x40] sm:$0xff]
    %v264 = vld [vmem:[#allocation8 + $0x48] sm:$0xff]
    %v265 = vld [vmem:[#allocation8 + $0x50] sm:$0xff]
    %v266 = vld [vmem:[#allocation8 + $0x58] sm:$0xff]
    %v267 = vld [vmem:[#allocation8 + $0x60] sm:$0xff]
    %v268 = vld [vmem:[#allocation8 + $0x68] sm:$0xff]
    %v269 = vld [vmem:[#allocation8 + $0x70] sm:$0xff]
    %v270 = vld [vmem:[#allocation8 + $0x78] sm:$0xff]
    %271 = vmatpush.msra.mxu0 %v270
    %272 = vmatpush.msra.mxu0 %v269
    %273 = vmatpush.msra.mxu0 %v268
    %274 = vmatpush.msra.mxu0 %v267
    %275 = vmatpush.msra.mxu0 %v266
    %276 = vmatpush.msra.mxu0 %v265
    %277 = vmatpush.msra.mxu0 %v264
    %278 = vmatpush.msra.mxu0 %v263
    %279 = vmatpush.msra.mxu0 %v262
    %280 = vmatpush.msra.mxu0 %v261
    %281 = vmatpush.msra.mxu0 %v260
    %282 = vmatpush.msra.mxu0 %v259
    %283 = vmatpush.msra.mxu0 %v258
    %284 = vmatpush.msra.mxu0 %v257
    %285 = vmatpush.msra.mxu0 %v256
    %286 = vmatpush.msra.mxu0 %v255
    %287 = vmatmul.f32.gmra.mxu0 %v251
    %v288 = vpop.f32.mrf.mxu0
    %v289 = vadd.f32 0.0, %v288
    %290 = vdwg.mxu0
    %v291 = vsub.f32 %v230, %v289
    %292 = vst [vmem:[#allocation2] sm:$0xff] %v291
    %v293 = vld [vmem:[#allocation2] sm:$0xff]
    %v294 = vand.u32 2147483647, %v293
    %295 = vmax.xlane.f32.xlu0 %v294
    %v296 = vpop.xlane.xlu0 %295
    %vm297 = vcmp.ge.f32.partialorder %v294, %v296
    %v298 = vsel %vm297, %v64, 128
    %v299 = vand.u32 %v298, 65535
    %v300 = vshra.s32 %v298, 16
    %v301 = vcvt.s32.f32 %v299
    %v302 = vcvt.s32.f32 %v300
    %303 = vmin.xlane.f32.xlu0 %v302
    %v304 = vpop.xlane.xlu0 %303
    %vm305 = vcmp.eq.f32.partialorder %v302, %v304
    %v306 = vsel %vm305, %v301, inf
    %307 = vmin.xlane.f32.xlu0 %v306
    %v308 = vpop.xlane.xlu0 %307
    %v309 = vcvt.f32.s32 %v308
    %v310 = vcvt.f32.s32 %v304
    %v311 = vshll.u32 %v310, 16
    %v312 = vadd.s32 %v311, %v309
    %vm313 = vcmp.eq.s32.totalorder %v64, %v312
    %v314 = vsel %vm313, %v293, 0.0
    %v315 = vld [vmem:[#allocation9] sm:$0xff]
    %v316 = vadd.f32 %v315, %v314
    %317 = vst [vmem:[#allocation9] sm:$0xff] %v316
    %v318 = vld [vmem:[#allocation9] sm:$0xff]
    %v319 = vld [vmem:[#allocation6] sm:$0xff]
    %v320 = vld [vmem:[#allocation6 + $0x8] sm:$0xff]
    %v321 = vld [vmem:[#allocation6 + $0x10] sm:$0xff]
    %v322 = vld [vmem:[#allocation6 + $0x18] sm:$0xff]
    %v323 = vld [vmem:[#allocation6 + $0x20] sm:$0xff]
    %v324 = vld [vmem:[#allocation6 + $0x28] sm:$0xff]
    %v325 = vld [vmem:[#allocation6 + $0x30] sm:$0xff]
    %v326 = vld [vmem:[#allocation6 + $0x38] sm:$0xff]
    %v327 = vld [vmem:[#allocation6 + $0x40] sm:$0xff]
    %v328 = vld [vmem:[#allocation6 + $0x48] sm:$0xff]
    %v329 = vld [vmem:[#allocation6 + $0x50] sm:$0xff]
    %v330 = vld [vmem:[#allocation6 + $0x58] sm:$0xff]
    %v331 = vld [vmem:[#allocation6 + $0x60] sm:$0xff]
    %v332 = vld [vmem:[#allocation6 + $0x68] sm:$0xff]
    %v333 = vld [vmem:[#allocation6 + $0x70] sm:$0xff]
    %v334 = vld [vmem:[#allocation6 + $0x78] sm:$0xff]
    %335 = vmatpush.msra.mxu0 %v334
    %336 = vmatpush.msra.mxu0 %v333
    %337 = vmatpush.msra.mxu0 %v332
    %338 = vmatpush.msra.mxu0 %v331
    %339 = vmatpush.msra.mxu0 %v330
    %340 = vmatpush.msra.mxu0 %v329
    %341 = vmatpush.msra.mxu0 %v328
    %342 = vmatpush.msra.mxu0 %v327
    %343 = vmatpush.msra.mxu0 %v326
    %344 = vmatpush.msra.mxu0 %v325
    %345 = vmatpush.msra.mxu0 %v324
    %346 = vmatpush.msra.mxu0 %v323
    %347 = vmatpush.msra.mxu0 %v322
    %348 = vmatpush.msra.mxu0 %v321
    %349 = vmatpush.msra.mxu0 %v320
    %350 = vmatpush.msra.mxu0 %v319
    %351 = vmatmul.f32.gmra.mxu0 %v318
    %v352 = vpop.f32.mrf.mxu0
    %v353 = vadd.f32 0.0, %v352
    %354 = vdwg.mxu0
    %355 = vst [vmem:[#allocation10] sm:$0xff] %v353
    // Predicated region
    $region26: #{tpu_custom_call.1} parent=1 // pred_check
      _
    $region27: #{tpu_custom_call.1} parent=1 // pred_check_branch
      %357 = sbr.rel (0) target = $region29
    $region28: #{tpu_custom_call.1} parent=1 // pred_region
      %359 = vsyncadd [#allocation5], 0
      %s361 = sshll.u32 [#allocation9], 4
      %s362 = int_to_ptr.vmem [resolvable:$true] %s361
      %s363 = sshll.u32 %s3, 4
      %s364 = int_to_ptr.hbm [resolvable:$true] %s363
      %366 = dma.vmem_to_hbm [thread:$0]  %s362, 128, %s364, [#allocation5]
    $region29: #{tpu_custom_call.1} parent=1 // pred_fallthru
      _
    // Predicated region
    $region30: #{tpu_custom_call.1} parent=1 // pred_check
      _
    $region31: #{tpu_custom_call.1} parent=1 // pred_check_branch
      %368 = sbr.rel (0) target = $region33
    $region32: #{tpu_custom_call.1} parent=1 // pred_region
      %370 = vsyncadd [#allocation11], 0
      %s372 = sshll.u32 [#allocation10], 4
      %s373 = int_to_ptr.vmem [resolvable:$true] %s372
      %s374 = sshll.u32 %s4, 4
      %s375 = int_to_ptr.hbm [resolvable:$true] %s374
      %377 = dma.vmem_to_hbm [thread:$0]  %s373, 128, %s375, [#allocation11]
    $region33: #{tpu_custom_call.1} parent=1 // pred_fallthru
      _
    // Predicated region
    $region34: #{tpu_custom_call.1} parent=1 // pred_check
      _
    $region35: #{tpu_custom_call.1} parent=1 // pred_check_branch
      %379 = sbr.rel (0) target = $region37
    $region36: #{tpu_custom_call.1} parent=1 // pred_region
      %381 = dma.done [#allocation5], 128
    $region37: #{tpu_custom_call.1} parent=1 // pred_fallthru
      _
    // Predicated region
    $region38: #{tpu_custom_call.1} parent=1 // pred_check
      _
    $region39: #{tpu_custom_call.1} parent=1 // pred_check_branch
      %383 = sbr.rel (0) target = $region41
    $region40: #{tpu_custom_call.1} parent=1 // pred_region
      %385 = dma.done [#allocation11], 128
    $region41: #{tpu_custom_call.1} parent=1 // pred_fallthru
      _
    %386 = vsyncpa [#allocation4], 1
    %387 = vsyncpa [#allocation7], 1
    %388 = vsyncpa [#allocation5], 1
    %389 = vsyncpa [#allocation11], 1

</llo_original>
